<compile_context>
chip_gen: v6e
topology: v6e:2x2x1
jax: 0.10.0
libtpu: 0.0.40
codegen_flags: <defaults>
</compile_context>

<pallas_src>
import functools

import jax
import jax.numpy as jnp
from jax import lax
from jax.experimental import pallas as pl
from jax.experimental.pallas import tpu as pltpu

_VMEM_LIMIT = 48 * 1024 * 1024  # explicit scoped-VMEM limit, safe on v5e/v6e/v7x


def _pick_rows(H, row_bytes, target_bytes=2 << 20, prefer_multi=False):
    """Largest multiple-of-8 divisor of H whose strip stays <= target_bytes.

    If prefer_multi, additionally require at least 2 strips (pipeline depth /
    megacore work even when B is small).  Falls back to the full H.
    """
    best = None
    for th in range(8, H + 1, 8):
        if H % th:
            continue
        if th * row_bytes > target_bytes:
            continue
        if prefer_multi and H // th < 2:
            continue
        best = th
    return best if best is not None else H


# ---------------------------------------------------------------------------
# Kernel 1: global average / max pool over spatial dims (per-strip partials)
# ---------------------------------------------------------------------------
def _pool_kernel(x_ref, out_ref):
    x = x_ref[0].astype(jnp.float32)                     # (TH, W, C)
    s = jnp.sum(x, axis=(0, 1)).reshape(1, -1)           # (1, C)
    m = jnp.max(x, axis=(0, 1)).reshape(1, -1)           # (1, C)
    out_ref[0, 0] = jnp.concatenate([s, m], axis=0)      # (2, C)


def global_pools(x_nhwc):
    """Global avg / max pool over (H, W).  Returns (avg, max), each (B, C) f32."""
    B, H, W, C = x_nhwc.shape
    th = _pick_rows(H, W * C * 4, prefer_multi=True)
    nt = H // th
    part = pl.pallas_call(
        _pool_kernel,
        out_shape=jax.ShapeDtypeStruct((B, nt, 2, C), jnp.float32),
        grid=(B, nt),
        in_specs=[pl.BlockSpec((1, th, W, C), lambda b, t: (b, t, 0, 0))],
        out_specs=pl.BlockSpec((1, 1, 2, C), lambda b, t: (b, t, 0, 0)),
        compiler_params=pltpu.CompilerParams(
            dimension_semantics=("parallel", "parallel"),
            vmem_limit_bytes=_VMEM_LIMIT),
    )(x_nhwc)
    avg = jnp.sum(part[:, :, 0, :], axis=1) / (H * W)
    mx = jnp.max(part[:, :, 1, :], axis=1)
    return avg, mx


# ---------------------------------------------------------------------------
# Kernel 2: fused EDE + LGA conv (attentions folded into the weights) per strip,
#   per-kh accumulation of 3 bf16 matmuls (K = ks*C), f32 accumulate,
#   plus per-strip BatchNorm partial sums (sum, sum of squares).
# ---------------------------------------------------------------------------
def _deam_main_kernel(xs_ref, w_ref, z_ref, stats_ref, *, ks, pad):
    xb = xs_ref[0, 0]                                    # (TH+2*pad, W, C) bf16, halo rows included
    THp, W, C = xb.shape
    TH = THp - 2 * pad

    acc = jnp.zeros((TH * W, C), jnp.float32)
    for kh in range(ks):                                 # per-kh accumulation (no 9C concat)
        rows = xb[kh:kh + TH]                            # (TH, W, C)
        taps = []
        for kw in range(ks):
            lo = kw - pad                                # width shift; zero-fill at the border
            if lo < 0:
                tap = jnp.concatenate(
                    [jnp.zeros((TH, -lo, C), xb.dtype), rows[:, :W + lo, :]], axis=1)
            elif lo > 0:
                tap = jnp.concatenate(
                    [rows[:, lo:, :], jnp.zeros((TH, lo, C), xb.dtype)], axis=1)
            else:
                tap = rows
            taps.append(tap.reshape(TH * W, C))
        patches = jnp.concatenate(taps, axis=-1)         # (TH*W, ks*C) bf16
        wk = w_ref[0, kh * ks * C:(kh + 1) * ks * C, :]  # (ks*C, C) bf16
        acc = acc + jnp.dot(patches, wk, preferred_element_type=jnp.float32)

    z_ref[0] = acc.reshape(TH, W, C).astype(z_ref.dtype)
    s1 = jnp.sum(acc, axis=0, keepdims=True)             # (1, C) f32
    s2 = jnp.sum(acc * acc, axis=0, keepdims=True)       # (1, C) f32
    stats_ref[0, 0] = jnp.concatenate([s1, s2], axis=0)  # (2, C)


def deam_main(x_strips, w_flat, *, k_size, padding):
    B, NT, THp, W, C = x_strips.shape
    TH = THp - 2 * padding
    H = NT * TH
    kern = functools.partial(_deam_main_kernel, ks=k_size, pad=padding)
    return pl.pallas_call(
        kern,
        out_shape=(jax.ShapeDtypeStruct((B, H, W, C), jnp.bfloat16),
                   jax.ShapeDtypeStruct((B, NT, 2, C), jnp.float32)),
        grid=(B, NT),
        in_specs=[
            pl.BlockSpec((1, 1, THp, W, C), lambda b, t: (b, t, 0, 0, 0)),
            pl.BlockSpec((1, k_size * k_size * C, C), lambda b, t: (b, 0, 0)),
        ],
        out_specs=(
            pl.BlockSpec((1, TH, W, C), lambda b, t: (b, t, 0, 0)),
            pl.BlockSpec((1, 1, 2, C), lambda b, t: (b, t, 0, 0)),
        ),
        compiler_params=pltpu.CompilerParams(
            dimension_semantics=("parallel", "parallel"),
            vmem_limit_bytes=_VMEM_LIMIT),
    )(x_strips, w_flat)


# ---------------------------------------------------------------------------
# Kernel 3: BatchNorm (precomputed per-channel scale/shift) + ReLU, bf16,
#   lane-dense (B, H, W*C) view, ~2 MiB blocks, output aliased onto z.
# ---------------------------------------------------------------------------
def _bn_relu_kernel(z_ref, scale_ref, shift_ref, o_ref):
    y = z_ref[0].astype(jnp.float32) * scale_ref[0] + shift_ref[0]   # (th, WC)
    o_ref[0] = jnp.maximum(y, 0.0).astype(o_ref.dtype)


def bn_relu(z2, scale_t, shift_t):
    B, H, WC = z2.shape
    th = _pick_rows(H, WC * z2.dtype.itemsize, target_bytes=2 << 20)
    return pl.pallas_call(
        _bn_relu_kernel,
        out_shape=jax.ShapeDtypeStruct((B, H, WC), z2.dtype),
        grid=(B, H // th),
        in_specs=[
            pl.BlockSpec((1, th, WC), lambda b, t: (b, t, 0)),
            pl.BlockSpec((1, 1, WC), lambda b, t: (0, 0, 0)),
            pl.BlockSpec((1, 1, WC), lambda b, t: (0, 0, 0)),
        ],
        out_specs=pl.BlockSpec((1, th, WC), lambda b, t: (b, t, 0)),
        input_output_aliases={0: 0},                     # write BN+ReLU back over z
        compiler_params=pltpu.CompilerParams(
            dimension_semantics=("parallel", "parallel"),
            vmem_limit_bytes=_VMEM_LIMIT),
    )(z2, scale_t, shift_t)


# ---------------------------------------------------------------------------
# Tiny attention glue (shared by the Pallas path and the pure-JAX reference)
# ---------------------------------------------------------------------------
def _conv1d3(v, w, b=None):
    # Conv1d(1, 1, kernel_size=3, padding=1) over the channel axis of (B, C)
    vp = jnp.pad(v, ((0, 0), (1, 1)))
    out = w[0] * vp[:, :-2] + w[1] * vp[:, 1:-1] + w[2] * vp[:, 2:]
    if b is not None:
        out = out + b
    return out


def _attention_glue(avg, mx, params):
    # EDE Attention (shared conv1d applied once)
    y = _conv1d3(avg, params["w1d_att"])                          # (B, C)
    in_att = jax.nn.sigmoid(y)
    out_att = jax.nn.sigmoid(y @ params["W_oc"].T)                # (B, C)
    kernel_att = jax.nn.softmax(y @ params["W_k"].T, axis=1)      # (B, KN)

    # LGA
    C = avg.shape[1]
    Ch = C // 2
    avg1, avg2, max2 = avg[:, :Ch], avg[:, Ch:], mx[:, Ch:]
    eca = jax.nn.sigmoid(_conv1d3(avg1, params["w1d_lga"], params["b1d_lga"]))

    def mlp(v):
        return jnp.maximum(v @ params["W_mlp1"].T, 0.0) @ params["W_mlp2"].T

    ch_out = jax.nn.sigmoid(mlp(max2) + mlp(avg2))
    lga_att = jnp.concatenate([eca, ch_out], axis=1)              # (B, C)
    return in_att, out_att, kernel_att, lga_att


# ---------------------------------------------------------------------------
# DEAM forward (Pallas path)
# ---------------------------------------------------------------------------
@functools.partial(jax.jit, static_argnames=("k_size", "stride", "padding", "groups"))
def deam_forward(x_nchw, params, *, k_size, stride, padding, groups):
    assert stride == 1, "Q + K requires matching spatial shapes -> stride must be 1"
    assert 2 * padding == k_size - 1, "padding must preserve spatial dims (== ks//2)"
    B, C, H, W = x_nchw.shape

    # TODO(synk): fold this NCHW->NHWC transpose into global_pools (emit an NHWC/bf16
    # copy as a second output) to drop a standalone full-HBM transpose pass.
    x = jnp.transpose(x_nchw, (0, 2, 3, 1)).astype(jnp.float32)   # NHWC

    # Pallas reduction kernel: global avg / max pools (strip-tiled)
    avg, mx = global_pools(x)

    in_att, out_att, kernel_att, lga_att = _attention_glue(avg, mx, params)

    # per-batch aggregated dynamic-conv weights, NHWC layout: (B, kh, kw, Cin, Cout)
    w_agg = jnp.einsum("bk,koihw->bhwio", kernel_att, params["weight"])
    # fold the channel attentions into the weights (the conv is linear)
    w_agg = w_agg * in_att[:, None, None, :, None] * out_att[:, None, None, None, :]
    # fold the K branch (channel shuffle * lga_att) into the CENTER TAP as a sparse
    # (Cin, Cout) matrix S[b, perm[o], o] = lga_att[b, perm[o]]
    n = jnp.arange(C)
    perm = (n % groups) * (C // groups) + (n // groups)
    sel = jax.nn.one_hot(perm, C, dtype=jnp.float32).T             # sel[i, o] = (perm[o] == i)
    w_agg = w_agg.at[:, padding, padding, :, :].add(lga_att[:, :, None] * sel[None])
    # flatten to (B, ks*ks*Cin, Cout), rows ordered (kh, kw, c_in); bf16 MXU operands
    w_flat = w_agg.reshape(B, k_size * k_size * C, C).astype(jnp.bfloat16)

    # Overlapping H-strips with halo rows, cast to bf16 (single fused XLA
    # pad+gather+cast; ~1.1x of x in bf16).  Keeps every grid step's VMEM bounded
    # and gives >B pipelined / megacore-parallel steps.
    TH = _pick_rows(H, W * C * 2, target_bytes=2 << 20, prefer_multi=True)
    NT = H // TH
    THp = TH + 2 * padding
    xpad = jnp.pad(x, ((0, 0), (padding, padding), (0, 0), (0, 0)))
    rows = jnp.arange(NT)[:, None] * TH + jnp.arange(THp)[None, :]
    x_strips = xpad[:, rows].astype(jnp.bfloat16)                  # (B, NT, THp, W, C)

    # Pallas main kernel: z = Q + K (bf16) plus per-strip BN partial sums (f32)
    z, stats = deam_main(x_strips, w_flat, k_size=k_size, padding=padding)

    # BatchNorm2d, training-mode semantics (batch stats, gamma=1, beta=0, eps=1e-5)
    nhw = B * H * W
    mean = jnp.sum(stats[:, :, 0, :], axis=(0, 1)) / nhw
    var = jnp.sum(stats[:, :, 1, :], axis=(0, 1)) / nhw - mean * mean
    scale = lax.rsqrt(var + 1e-5)
    shift = -mean * scale

    # lane-dense view for the elementwise BN+ReLU pass (reshape is a bitcast)
    z2 = z.reshape(B, H, W * C)
    scale_t = jnp.tile(scale, W).reshape(1, 1, W * C)
    shift_t = jnp.tile(shift, W).reshape(1, 1, W * C)
    out = bn_relu(z2, scale_t, shift_t).reshape(B, H, W, C).astype(jnp.float32)
    # TODO(synk): fuse this NHWC->NCHW transpose into the bn_relu epilogue.
    # TODO(synk): DEAM.__init__ defines self.conv (3x3) but never uses it in forward; omitted.
    return jnp.transpose(out, (0, 3, 1, 2))                        # back to NCHW


# ---------------------------------------------------------------------------
# Pure-JAX reference (mirrors the PyTorch forward) for a correctness check
# ---------------------------------------------------------------------------
def reference_forward(x_nchw, params, *, k_size, stride, padding, groups):
    B, C, H, W = x_nchw.shape
    x = x_nchw.astype(jnp.float32)
    avg = jnp.mean(x, axis=(2, 3))
    mx = jnp.max(x, axis=(2, 3))
    in_att, out_att, kernel_att, lga_att = _attention_glue(avg, mx, params)

    x_scaled = x * in_att[:, :, None, None]
    w_b = jnp.einsum("bk,koihw->boihw", kernel_att, params["weight"])   # (B, Co, Ci, kh, kw)

    def conv_b(xb, wb):
        return lax.conv_general_dilated(
            xb[None], wb, window_strides=(stride, stride),
            padding=((padding, padding), (padding, padding)),
            dimension_numbers=("NCHW", "OIHW", "NCHW"))[0]

    q = jax.vmap(conv_b)(x_scaled, w_b) * out_att[:, :, None, None]

    k = x * lga_att[:, :, None, None]
    k = k.reshape(B, groups, C // groups, H, W).transpose(0, 2, 1, 3, 4).reshape(B, C, H, W)

    z = q + k
    mean = jnp.mean(z, axis=(0, 2, 3))
    var = jnp.var(z, axis=(0, 2, 3))
    zn = (z - mean[None, :, None, None]) / jnp.sqrt(var[None, :, None, None] + 1e-5)
    return jnp.maximum(zn, 0.0)


# ---------------------------------------------------------------------------
# Deterministic parameter init (shapes from the PyTorch __init__)
# ---------------------------------------------------------------------------
def init_params(key, C, KN, ks, reduction):
    keys = jax.random.split(key, 8)

    def kaiming_out(k, shape, fan_out):
        return jax.random.normal(k, shape, jnp.float32) * jnp.sqrt(2.0 / fan_out)

    return {
        # Attention (EDE)
        "w1d_att": jax.random.normal(keys[0], (3,), jnp.float32) * 0.3,          # Conv1d(1,1,3,no bias)
        "W_oc": kaiming_out(keys[1], (C, C), C),                                  # Conv2d(C,C,1,no bias)
        "W_k": kaiming_out(keys[2], (KN, C), KN),                                 # Conv2d(C,KN,1,no bias)
        # EDE dynamic-conv bank
        "weight": kaiming_out(keys[3], (KN, C, C, ks, ks), C * ks * ks),
        # LGA
        "w1d_lga": jax.random.normal(keys[4], (3,), jnp.float32) * 0.3,           # Conv1d(1,1,3)+bias
        "b1d_lga": jax.random.normal(keys[5], (), jnp.float32) * 0.1,
        "W_mlp1": jax.random.normal(keys[6], (C // reduction, C // 2), jnp.float32)
        * (1.0 / jnp.sqrt(C / 2)),
        "W_mlp2": jax.random.normal(keys[7], (C // 2, C // reduction), jnp.float32)
        * (1.0 / jnp.sqrt(max(C // reduction, 1))),
    }


if __name__ == "__main__":
    B, C, H, W = 2, 32, 16, 16
    KN, k_size, stride, padding, reduction, groups = 4, 3, 1, 1, 16, 4

    key = jax.random.PRNGKey(0)
    kx, kp = jax.random.split(key)
    x = jax.random.normal(kx, (B, C, H, W), jnp.float32)
    params = init_params(kp, C, KN, k_size, reduction)

    out = deam_forward(x, params, k_size=k_size, stride=stride,
                       padding=padding, groups=groups)
    out = jax.block_until_ready(out)
    assert out.shape == (B, C, H, W)

    ref = reference_forward(x, params, k_size=k_size, stride=stride,
                            padding=padding, groups=groups)
    ref = jax.block_until_ready(ref)
    max_err = float(jnp.max(jnp.abs(out - ref)))
    # tolerance sized for bf16 matmul operands + bf16 z storage (f32 accumulation)
    assert jnp.allclose(out, ref, atol=5e-2, rtol=5e-2), f"mismatch, max err {max_err}"

    print("KERNEL_OK")
</pallas_src>

<mosaic_0001>
module attributes {stable_mosaic.version = 11 : i64} {
  func.func @_pool_kernel(%arg0: i32, %arg1: i32, %arg2: memref<1x8x16x32xf32, #tpu.memory_space<vmem>>, %arg3: memref<1x1x2x32xf32, #tpu.memory_space<vmem>>) attributes {dimension_semantics = [#tpu.dimension_semantics<parallel>, #tpu.dimension_semantics<parallel>], iteration_bounds = array<i64: 2, 2>, scalar_prefetch = 0 : i64, scratch_operands = 0 : i64, tpu.core_type = #tpu.core_type<tc>, window_params = [{transform_indices = @transform_0, window_bounds = array<i64: 1, 8, 16, 32>}, {transform_indices = @transform_1, window_bounds = array<i64: 1, 1, 2, 32>}]} {
    %c0 = arith.constant 0 : index
    %c0_0 = arith.constant 0 : index
    %c0_1 = arith.constant 0 : index
    %c0_2 = arith.constant 0 : index
    %0 = vector.load %arg2[%c0, %c0_0, %c0_1, %c0_2] : memref<1x8x16x32xf32, #tpu.memory_space<vmem>>, vector<1x8x16x32xf32>
    %1 = vector.shape_cast %0 : vector<1x8x16x32xf32> to vector<8x16x32xf32>
    %cst = arith.constant dense<0.000000e+00> : vector<32xf32>
    %2 = vector.multi_reduction <add>, %1, %cst [0, 1] : vector<8x16x32xf32> to vector<32xf32>
    %3 = vector.shape_cast %2 : vector<32xf32> to vector<1x32xf32>
    %cst_3 = arith.constant dense<0xFF800000> : vector<32xf32>
    %4 = vector.multi_reduction <maximumf>, %1, %cst_3 [0, 1] : vector<8x16x32xf32> to vector<32xf32>
    %5 = vector.shape_cast %4 : vector<32xf32> to vector<1x32xf32>
    %6 = tpu.concatenate %3, %5 in 0 : vector<1x32xf32>, vector<1x32xf32> -> vector<2x32xf32>
    %c0_4 = arith.constant 0 : index
    %c0_5 = arith.constant 0 : index
    %c0_6 = arith.constant 0 : index
    %c0_7 = arith.constant 0 : index
    %7 = vector.load %arg3[%c0_4, %c0_5, %c0_6, %c0_7] : memref<1x1x2x32xf32, #tpu.memory_space<vmem>>, vector<1x1x2x32xf32>
    %8 = vector.shape_cast %7 : vector<1x1x2x32xf32> to vector<2x32xf32>
    %9 = vector.shape_cast %6 : vector<2x32xf32> to vector<1x1x2x32xf32>
    tpu.vector_store %arg3[%c0_4, %c0_5, %c0_6, %c0_7], %9 {strides = array<i32>} : memref<1x1x2x32xf32, #tpu.memory_space<vmem>>, vector<1x1x2x32xf32>,
    return
  }
  func.func @transform_0(%arg0: i32, %arg1: i32) -> (i32, i32, i32, i32) {
    %c0_i32 = arith.constant 0 : i32
    %c0_i32_0 = arith.constant 0 : i32
    %c0_i32_1 = arith.constant 0 : i32
    return %arg0, %arg1, %c0_i32, %c0_i32_0 : i32, i32, i32, i32
  }
  func.func @transform_1(%arg0: i32, %arg1: i32) -> (i32, i32, i32, i32) {
    %c0_i32 = arith.constant 0 : i32
    %c0_i32_0 = arith.constant 0 : i32
    %c0_i32_1 = arith.constant 0 : i32
    return %arg0, %arg1, %c0_i32, %c0_i32_0 : i32, i32, i32, i32
  }
}

module attributes {stable_mosaic.version = 11 : i64} {
  func.func @_deam_main_kernel(%arg0: i32, %arg1: i32, %arg2: memref<1x1x10x16x32xbf16, #tpu.memory_space<vmem>>, %arg3: memref<1x288x32xbf16, #tpu.memory_space<vmem>>, %arg4: memref<1x8x16x32xbf16, #tpu.memory_space<vmem>>, %arg5: memref<1x1x2x32xf32, #tpu.memory_space<vmem>>) attributes {dimension_semantics = [#tpu.dimension_semantics<parallel>, #tpu.dimension_semantics<parallel>], iteration_bounds = array<i64: 2, 2>, scalar_prefetch = 0 : i64, scratch_operands = 0 : i64, tpu.core_type = #tpu.core_type<tc>, window_params = [{transform_indices = @transform_0, window_bounds = array<i64: 1, 1, 10, 16, 32>}, {transform_indices = @transform_1, window_bounds = array<i64: 1, 288, 32>}, {transform_indices = @transform_2, window_bounds = array<i64: 1, 8, 16, 32>}, {transform_indices = @transform_3, window_bounds = array<i64: 1, 1, 2, 32>}]} {
    %c0 = arith.constant 0 : index
    %c0_0 = arith.constant 0 : index
    %c0_1 = arith.constant 0 : index
    %c0_2 = arith.constant 0 : index
    %c0_3 = arith.constant 0 : index
    %0 = vector.load %arg2[%c0, %c0_0, %c0_1, %c0_2, %c0_3] : memref<1x1x10x16x32xbf16, #tpu.memory_space<vmem>>, vector<1x1x10x16x32xbf16>
    %1 = vector.shape_cast %0 : vector<1x1x10x16x32xbf16> to vector<10x16x32xbf16>
    %cst = arith.constant 0.000000e+00 : f32
    %2 = vector.broadcast %cst : f32 to vector<128x32xf32>
    %3 = vector.extract_strided_slice %1 {offsets = [0, 0, 0], sizes = [8, 16, 32], strides = [1, 1, 1]} : vector<10x16x32xbf16> to vector<8x16x32xbf16>
    %cst_4 = arith.constant 0.000000e+00 : bf16
    %4 = vector.broadcast %cst_4 : bf16 to vector<8x1x32xbf16>
    %5 = vector.extract_strided_slice %3 {offsets = [0, 0, 0], sizes = [8, 15, 32], strides = [1, 1, 1]} : vector<8x16x32xbf16> to vector<8x15x32xbf16>
    %6 = tpu.concatenate %4, %5 in 1 : vector<8x1x32xbf16>, vector<8x15x32xbf16> -> vector<8x16x32xbf16>
    %7 = vector.shape_cast %6 : vector<8x16x32xbf16> to vector<128x32xbf16>
    %8 = vector.shape_cast %3 : vector<8x16x32xbf16> to vector<128x32xbf16>
    %9 = vector.extract_strided_slice %3 {offsets = [0, 1, 0], sizes = [8, 15, 32], strides = [1, 1, 1]} : vector<8x16x32xbf16> to vector<8x15x32xbf16>
    %cst_5 = arith.constant 0.000000e+00 : bf16
    %10 = vector.broadcast %cst_5 : bf16 to vector<8x1x32xbf16>
    %11 = tpu.concatenate %9, %10 in 1 : vector<8x15x32xbf16>, vector<8x1x32xbf16> -> vector<8x16x32xbf16>
    %12 = vector.shape_cast %11 : vector<8x16x32xbf16> to vector<128x32xbf16>
    %13 = tpu.concatenate %7, %8, %12 in 1 : vector<128x32xbf16>, vector<128x32xbf16>, vector<128x32xbf16> -> vector<128x96xbf16>
    %c0_6 = arith.constant 0 : index
    %c0_7 = arith.constant 0 : index
    %c0_8 = arith.constant 0 : index
    %14 = vector.load %arg3[%c0_6, %c0_7, %c0_8] : memref<1x288x32xbf16, #tpu.memory_space<vmem>>, vector<1x96x32xbf16>
    %15 = vector.shape_cast %14 : vector<1x96x32xbf16> to vector<96x32xbf16>
    %cst_9 = arith.constant dense<0.000000e+00> : vector<128x32xf32>
    %16 = tpu.matmul %13, %15, %cst_9 {dimension_numbers = #tpu.dot_dimension_numbers<[1], [0], [0], [1], [0, 0, 1, 1], [], []>} : vector<128x96xbf16>, vector<96x32xbf16>, vector<128x32xf32> -> vector<128x32xf32>
    %17 = arith.addf %2, %16 : vector<128x32xf32>
    %18 = vector.extract_strided_slice %1 {offsets = [1, 0, 0], sizes = [8, 16, 32], strides = [1, 1, 1]} : vector<10x16x32xbf16> to vector<8x16x32xbf16>
    %cst_10 = arith.constant 0.000000e+00 : bf16
    %19 = vector.broadcast %cst_10 : bf16 to vector<8x1x32xbf16>
    %20 = vector.extract_strided_slice %18 {offsets = [0, 0, 0], sizes = [8, 15, 32], strides = [1, 1, 1]} : vector<8x16x32xbf16> to vector<8x15x32xbf16>
    %21 = tpu.concatenate %19, %20 in 1 : vector<8x1x32xbf16>, vector<8x15x32xbf16> -> vector<8x16x32xbf16>
    %22 = vector.shape_cast %21 : vector<8x16x32xbf16> to vector<128x32xbf16>
    %23 = vector.shape_cast %18 : vector<8x16x32xbf16> to vector<128x32xbf16>
    %24 = vector.extract_strided_slice %18 {offsets = [0, 1, 0], sizes = [8, 15, 32], strides = [1, 1, 1]} : vector<8x16x32xbf16> to vector<8x15x32xbf16>
    %cst_11 = arith.constant 0.000000e+00 : bf16
    %25 = vector.broadcast %cst_11 : bf16 to vector<8x1x32xbf16>
    %26 = tpu.concatenate %24, %25 in 1 : vector<8x15x32xbf16>, vector<8x1x32xbf16> -> vector<8x16x32xbf16>
    %27 = vector.shape_cast %26 : vector<8x16x32xbf16> to vector<128x32xbf16>
    %28 = tpu.concatenate %22, %23, %27 in 1 : vector<128x32xbf16>, vector<128x32xbf16>, vector<128x32xbf16> -> vector<128x96xbf16>
    %c0_12 = arith.constant 0 : index
    %c96 = arith.constant 96 : index
    %c0_13 = arith.constant 0 : index
    %29 = vector.load %arg3[%c0_12, %c96, %c0_13] : memref<1x288x32xbf16, #tpu.memory_space<vmem>>, vector<1x96x32xbf16>
    %30 = vector.shape_cast %29 : vector<1x96x32xbf16> to vector<96x32xbf16>
    %cst_14 = arith.constant dense<0.000000e+00> : vector<128x32xf32>
    %31 = tpu.matmul %28, %30, %cst_14 {dimension_numbers = #tpu.dot_dimension_numbers<[1], [0], [0], [1], [0, 0, 1, 1], [], []>} : vector<128x96xbf16>, vector<96x32xbf16>, vector<128x32xf32> -> vector<128x32xf32>
    %32 = arith.addf %17, %31 : vector<128x32xf32>
    %33 = vector.extract_strided_slice %1 {offsets = [2, 0, 0], sizes = [8, 16, 32], strides = [1, 1, 1]} : vector<10x16x32xbf16> to vector<8x16x32xbf16>
    %cst_15 = arith.constant 0.000000e+00 : bf16
    %34 = vector.broadcast %cst_15 : bf16 to vector<8x1x32xbf16>
    %35 = vector.extract_strided_slice %33 {offsets = [0, 0, 0], sizes = [8, 15, 32], strides = [1, 1, 1]} : vector<8x16x32xbf16> to vector<8x15x32xbf16>
    %36 = tpu.concatenate %34, %35 in 1 : vector<8x1x32xbf16>, vector<8x15x32xbf16> -> vector<8x16x32xbf16>
    %37 = vector.shape_cast %36 : vector<8x16x32xbf16> to vector<128x32xbf16>
    %38 = vector.shape_cast %33 : vector<8x16x32xbf16> to vector<128x32xbf16>
    %39 = vector.extract_strided_slice %33 {offsets = [0, 1, 0], sizes = [8, 15, 32], strides = [1, 1, 1]} : vector<8x16x32xbf16> to vector<8x15x32xbf16>
    %cst_16 = arith.constant 0.000000e+00 : bf16
    %40 = vector.broadcast %cst_16 : bf16 to vector<8x1x32xbf16>
    %41 = tpu.concatenate %39, %40 in 1 : vector<8x15x32xbf16>, vector<8x1x32xbf16> -> vector<8x16x32xbf16>
    %42 = vector.shape_cast %41 : vector<8x16x32xbf16> to vector<128x32xbf16>
    %43 = tpu.concatenate %37, %38, %42 in 1 : vector<128x32xbf16>, vector<128x32xbf16>, vector<128x32xbf16> -> vector<128x96xbf16>
    %c0_17 = arith.constant 0 : index
    %c192 = arith.constant 192 : index
    %c0_18 = arith.constant 0 : index
    %44 = vector.load %arg3[%c0_17, %c192, %c0_18] : memref<1x288x32xbf16, #tpu.memory_space<vmem>>, vector<1x96x32xbf16>
    %45 = vector.shape_cast %44 : vector<1x96x32xbf16> to vector<96x32xbf16>
    %cst_19 = arith.constant dense<0.000000e+00> : vector<128x32xf32>
    %46 = tpu.matmul %43, %45, %cst_19 {dimension_numbers = #tpu.dot_dimension_numbers<[1], [0], [0], [1], [0, 0, 1, 1], [], []>} : vector<128x96xbf16>, vector<96x32xbf16>, vector<128x32xf32> -> vector<128x32xf32>
    %47 = arith.addf %32, %46 : vector<128x32xf32>
    %48 = vector.shape_cast %47 : vector<128x32xf32> to vector<8x16x32xf32>
    %49 = arith.truncf %48 : vector<8x16x32xf32> to vector<8x16x32xbf16>
    %c0_20 = arith.constant 0 : index
    %c0_21 = arith.constant 0 : index
    %c0_22 = arith.constant 0 : index
    %c0_23 = arith.constant 0 : index
    %50 = vector.load %arg4[%c0_20, %c0_21, %c0_22, %c0_23] : memref<1x8x16x32xbf16, #tpu.memory_space<vmem>>, vector<1x8x16x32xbf16>
    %51 = vector.shape_cast %50 : vector<1x8x16x32xbf16> to vector<8x16x32xbf16>
    %52 = vector.shape_cast %49 : vector<8x16x32xbf16> to vector<1x8x16x32xbf16>
    tpu.vector_store %arg4[%c0_20, %c0_21, %c0_22, %c0_23], %52 {strides = array<i32>} : memref<1x8x16x32xbf16, #tpu.memory_space<vmem>>, vector<1x8x16x32xbf16>,
    %cst_24 = arith.constant dense<0.000000e+00> : vector<32xf32>
    %53 = vector.multi_reduction <add>, %47, %cst_24 [0] : vector<128x32xf32> to vector<32xf32>
    %54 = vector.shape_cast %53 : vector<32xf32> to vector<1x32xf32>
    %55 = arith.mulf %47, %47 : vector<128x32xf32>
    %cst_25 = arith.constant dense<0.000000e+00> : vector<32xf32>
    %56 = vector.multi_reduction <add>, %55, %cst_25 [0] : vector<128x32xf32> to vector<32xf32>
    %57 = vector.shape_cast %56 : vector<32xf32> to vector<1x32xf32>
    %58 = tpu.concatenate %54, %57 in 0 : vector<1x32xf32>, vector<1x32xf32> -> vector<2x32xf32>
    %c0_26 = arith.constant 0 : index
    %c0_27 = arith.constant 0 : index
    %c0_28 = arith.constant 0 : index
    %c0_29 = arith.constant 0 : index
    %59 = vector.load %arg5[%c0_26, %c0_27, %c0_28, %c0_29] : memref<1x1x2x32xf32, #tpu.memory_space<vmem>>, vector<1x1x2x32xf32>
    %60 = vector.shape_cast %59 : vector<1x1x2x32xf32> to vector<2x32xf32>
    %61 = vector.shape_cast %58 : vector<2x32xf32> to vector<1x1x2x32xf32>
    tpu.vector_store %arg5[%c0_26, %c0_27, %c0_28, %c0_29], %61 {strides = array<i32>} : memref<1x1x2x32xf32, #tpu.memory_space<vmem>>, vector<1x1x2x32xf32>,
    return
  }
  func.func @transform_0(%arg0: i32, %arg1: i32) -> (i32, i32, i32, i32, i32) {
    %c0_i32 = arith.constant 0 : i32
    %c0_i32_0 = arith.constant 0 : i32
    %c0_i32_1 = arith.constant 0 : i32
    %c0_i32_2 = arith.constant 0 : i32
    return %arg0, %arg1, %c0_i32, %c0_i32_0, %c0_i32_1 : i32, i32, i32, i32, i32
  }
  func.func @transform_1(%arg0: i32, %arg1: i32) -> (i32, i32, i32) {
    %c0_i32 = arith.constant 0 : i32
    %c0_i32_0 = arith.constant 0 : i32
    %c0_i32_1 = arith.constant 0 : i32
    return %arg0, %c0_i32, %c0_i32_0 : i32, i32, i32
  }
  func.func @transform_2(%arg0: i32, %arg1: i32) -> (i32, i32, i32, i32) {
    %c0_i32 = arith.constant 0 : i32
    %c0_i32_0 = arith.constant 0 : i32
    %c0_i32_1 = arith.constant 0 : i32
    return %arg0, %arg1, %c0_i32, %c0_i32_0 : i32, i32, i32, i32
  }
  func.func @transform_3(%arg0: i32, %arg1: i32) -> (i32, i32, i32, i32) {
    %c0_i32 = arith.constant 0 : i32
    %c0_i32_0 = arith.constant 0 : i32
    %c0_i32_1 = arith.constant 0 : i32
    return %arg0, %arg1, %c0_i32, %c0_i32_0 : i32, i32, i32, i32
  }
}

module attributes {stable_mosaic.version = 11 : i64} {
  func.func @_bn_relu_kernel(%arg0: i32, %arg1: i32, %arg2: memref<1x16x512xbf16, #tpu.memory_space<vmem>>, %arg3: memref<1x1x512xf32, #tpu.memory_space<vmem>>, %arg4: memref<1x1x512xf32, #tpu.memory_space<vmem>>, %arg5: memref<1x16x512xbf16, #tpu.memory_space<vmem>>) attributes {dimension_semantics = [#tpu.dimension_semantics<parallel>, #tpu.dimension_semantics<parallel>], iteration_bounds = array<i64: 2, 1>, scalar_prefetch = 0 : i64, scratch_operands = 0 : i64, tpu.core_type = #tpu.core_type<tc>, window_params = [{transform_indices = @transform_0, window_bounds = array<i64: 1, 16, 512>}, {pipeline_mode = #tpu.pipeline_mode<synchronous>, transform_indices = @transform_1, window_bounds = array<i64: 1, 1, 512>}, {pipeline_mode = #tpu.pipeline_mode<synchronous>, transform_indices = @transform_2, window_bounds = array<i64: 1, 1, 512>}, {transform_indices = @transform_3, window_bounds = array<i64: 1, 16, 512>}]} {
    %c0 = arith.constant 0 : index
    %c0_0 = arith.constant 0 : index
    %c0_1 = arith.constant 0 : index
    %0 = vector.load %arg2[%c0, %c0_0, %c0_1] : memref<1x16x512xbf16, #tpu.memory_space<vmem>>, vector<1x16x512xbf16>
    %1 = vector.shape_cast %0 : vector<1x16x512xbf16> to vector<16x512xbf16>
    %2 = arith.extf %1 : vector<16x512xbf16> to vector<16x512xf32>
    %c0_2 = arith.constant 0 : index
    %c0_3 = arith.constant 0 : index
    %c0_4 = arith.constant 0 : index
    %3 = vector.load %arg3[%c0_2, %c0_3, %c0_4] : memref<1x1x512xf32, #tpu.memory_space<vmem>>, vector<1x1x512xf32>
    %4 = vector.shape_cast %3 : vector<1x1x512xf32> to vector<1x512xf32>
    %5 = vector.broadcast %4 : vector<1x512xf32> to vector<16x512xf32>
    %6 = arith.mulf %2, %5 : vector<16x512xf32>
    %c0_5 = arith.constant 0 : index
    %c0_6 = arith.constant 0 : index
    %c0_7 = arith.constant 0 : index
    %7 = vector.load %arg4[%c0_5, %c0_6, %c0_7] : memref<1x1x512xf32, #tpu.memory_space<vmem>>, vector<1x1x512xf32>
    %8 = vector.shape_cast %7 : vector<1x1x512xf32> to vector<1x512xf32>
    %9 = vector.broadcast %8 : vector<1x512xf32> to vector<16x512xf32>
    %10 = arith.addf %6, %9 : vector<16x512xf32>
    %cst = arith.constant 0.000000e+00 : f32
    %11 = vector.broadcast %cst : f32 to vector<16x512xf32>
    %12 = arith.maximumf %10, %11 : vector<16x512xf32>
    %13 = arith.truncf %12 : vector<16x512xf32> to vector<16x512xbf16>
    %c0_8 = arith.constant 0 : index
    %c0_9 = arith.constant 0 : index
    %c0_10 = arith.constant 0 : index
    %14 = vector.load %arg5[%c0_8, %c0_9, %c0_10] : memref<1x16x512xbf16, #tpu.memory_space<vmem>>, vector<1x16x512xbf16>
    %15 = vector.shape_cast %14 : vector<1x16x512xbf16> to vector<16x512xbf16>
    %16 = vector.shape_cast %13 : vector<16x512xbf16> to vector<1x16x512xbf16>
    tpu.vector_store %arg5[%c0_8, %c0_9, %c0_10], %16 {strides = array<i32>} : memref<1x16x512xbf16, #tpu.memory_space<vmem>>, vector<1x16x512xbf16>,
    return
  }
  func.func @transform_0(%arg0: i32, %arg1: i32) -> (i32, i32, i32) {
    %c0_i32 = arith.constant 0 : i32
    %c0_i32_0 = arith.constant 0 : i32
    return %arg0, %arg1, %c0_i32 : i32, i32, i32
  }
  func.func @transform_1(%arg0: i32, %arg1: i32) -> (i32, i32, i32) {
    %c0_i32 = arith.constant 0 : i32
    %c0_i32_0 = arith.constant 0 : i32
    %c0_i32_1 = arith.constant 0 : i32
    %c0_i32_2 = arith.constant 0 : i32
    return %c0_i32, %c0_i32_0, %c0_i32_1 : i32, i32, i32
  }
  func.func @transform_2(%arg0: i32, %arg1: i32) -> (i32, i32, i32) {
    %c0_i32 = arith.constant 0 : i32
    %c0_i32_0 = arith.constant 0 : i32
    %c0_i32_1 = arith.constant 0 : i32
    %c0_i32_2 = arith.constant 0 : i32
    return %c0_i32, %c0_i32_0, %c0_i32_1 : i32, i32, i32
  }
  func.func @transform_3(%arg0: i32, %arg1: i32) -> (i32, i32, i32) {
    %c0_i32 = arith.constant 0 : i32
    %c0_i32_0 = arith.constant 0 : i32
    return %arg0, %arg1, %c0_i32 : i32, i32, i32
  }
}

</mosaic_0001>

<llo_original>
// kernel: deam_forward.3
$region0: #{deam_forward.3}
  #allocation0 [shape = 'u32[]', space=smem, size = 0x4, offset = 0x4, fixed_abs, tag = 'smem constant byte address 0x4 - core index']
  #allocation1 [shape = 'u32[144,128]{1,0:T(1,128)}', space=vmem, size = 0x12000, scoped, tag = 'internal scratch']
  %s0 = inlined_call_operand.hbm [shape: f32[2,16,16,32], index: 0, kind: input, shape index: {}]
  %s1 = inlined_call_operand.vmem [shape: f32[2,2,2,32], index: 1, kind: output, shape index: {}]
  %s2 = sld [smem:[#allocation0]]
  $region41: #{deam_forward.3} parent=0
    _
  %s4 = ssub.s32 1, %s2
  %s5 = scalar_select 0, %s4, %s2
  $region1: #{deam_forward.3} parent=0
    #allocation2 [shape = 'u8[131072]{0}', space=vmem, size = 0x20000, scoped, tag = 'input window, operand 0']
    #allocation3 [shape = 's32[2]{0}', space=sflag, size = 0x8, scoped, tag = 'scoped memory for deam_forward.3']
    %6 = vsyncpa [#allocation3], 0
    %s7 = scalar_lea.sflag [#allocation3], 1
    %8 = vsyncpa %s7, 0
    loop: start=0, step=1, limit=6
    $region2: #{deam_forward.3} parent=1 // loop_pre_header
      _
    $region3: #{deam_forward.3} parent=1 // loop_header
      %s10 = sphi 0, %s14
      %p11 = scmp.ge.s32.totalorder %s10, 6
      %s17 = sphi 0, %s29
      %s18 = sphi 0, %s25
      %s19 = sphi 0, %s17
      %s20 = sphi 0, %s18
      %s21 = sphi 0, %s19
      %s22 = sphi 0, %s20
      %s34 = sphi 0, %s36
      %s37 = sphi 0, %s34
      %s38 = sphi 0, %s37
      %s54 = sphi 0, %s38
      %s62 = sphi 0, %s64
      %s65 = sphi 0, %s62
      %s66 = sphi 0, %s65
      %s82 = sphi 0, %s66
    $region4: #{deam_forward.3} parent=1 // loop_header_branch
      %13 = sbr.rel (%p11) target = $region8
    $region5: #{deam_forward.3} parent=1 // loop_body
      %s15 = ssub.s32 %s10, 1
      %s16 = ssub.s32 %s10, 2
      %s23 = sadd.s32 1, %s18
      %p24 = scmp.ge.s32.totalorder %s23, 2
      %s25 = scalar_select %p24, 0, %s23
      %s26 = sadd.s32 1, %s17
      %s27 = scalar_select %p24, %s26, %s17
      %p28 = scmp.ge.s32.totalorder %s27, 2
      %s29 = scalar_select %p28, 0, %s27
      %s30 = ssub.s32 %s17, %s29
      %s31 = ssub.s32 %s18, %s25
      %s32 = sor.u32 %s30, %s31
      %p33 = scmp.eq.s32.totalorder %s32, 0
      %s35 = sadd.s32 %s34, 1
      %s36 = scalar_select %p33, %s34, %s35
      %p39 = pneg %p33
      %p40 = scmp.eq.s32.totalorder %s10, 3
      %p41 = por %p39, %p40
      %p42 = scmp.ne.s32.totalorder %s34, %s37
      %p43 = scmp.eq.s32.totalorder %s10, 0
      %p44 = por %p42, %p43
      %p45 = scmp.ne.s32.totalorder %s34, %s37
      %p46 = scmp.eq.s32.totalorder %s15, 3
      %p47 = por %p45, %p46
      %p48 = scmp.ne.s32.totalorder %s37, %s38
      %p49 = scmp.eq.s32.totalorder %s15, 0
      %p50 = por %p48, %p49
      %p51 = scmp.ne.s32.totalorder %s37, %s38
      %p52 = scmp.eq.s32.totalorder %s16, 3
      %p53 = por %p51, %p52
      %p55 = scmp.ne.s32.totalorder %s38, %s54
      %p56 = scmp.eq.s32.totalorder %s16, 0
      %p57 = por %p55, %p56
      %s58 = ssub.s32 %s17, %s29
      %s59 = ssub.s32 %s18, %s25
      %s60 = sor.u32 %s58, %s59
      %p61 = scmp.eq.s32.totalorder %s60, 0
      %s63 = sadd.s32 %s62, 1
      %s64 = scalar_select %p61, %s62, %s63
      %p67 = pneg %p61
      %p68 = scmp.eq.s32.totalorder %s10, 3
      %p69 = por %p67, %p68
      %p70 = scmp.ne.s32.totalorder %s62, %s65
      %p71 = scmp.eq.s32.totalorder %s10, 0
      %p72 = por %p70, %p71
      %p73 = scmp.ne.s32.totalorder %s62, %s65
      %p74 = scmp.eq.s32.totalorder %s15, 3
      %p75 = por %p73, %p74
      %p76 = scmp.ne.s32.totalorder %s65, %s66
      %p77 = scmp.eq.s32.totalorder %s15, 0
      %p78 = por %p76, %p77
      %p79 = scmp.ne.s32.totalorder %s65, %s66
      %p80 = scmp.eq.s32.totalorder %s16, 3
      %p81 = por %p79, %p80
      %p83 = scmp.ne.s32.totalorder %s66, %s82
      %p84 = scmp.eq.s32.totalorder %s16, 0
      %p85 = por %p83, %p84
      %p86 = scmp.le.s32.totalorder 1, %s10
      %p87 = scmp.lt.s32.totalorder %s10, 5
      %p88 = pnand %p86, %p87
      %p89 = pneg %p88
      // Predicated region
      $region9: #{deam_forward.3} parent=5 // pred_check
        _
      $region10: #{deam_forward.3} parent=5 // pred_check_branch
        %91 = sbr.rel (%p88) target = $region12
      $region11: #{deam_forward.3} parent=5 // pred_region
        %s92 = ssub.s32 %s10, 1
      $region12: #{deam_forward.3} parent=5 // pred_fallthru
        _
      %p93 = scmp.lt.s32.totalorder %s10, 4
      // Predicated region
      $region13: #{deam_forward.3} parent=5 // pred_check
        %p94 = pneg %p93
      $region14: #{deam_forward.3} parent=5 // pred_check_branch
        %96 = sbr.rel (%p94) target = $region16
      $region15: #{deam_forward.3} parent=5 // pred_region
        // Predicated region
        $region17: #{deam_forward.3} parent=15 // pred_check
          %p97 = pneg %p44
        $region18: #{deam_forward.3} parent=15 // pred_check_branch
          %99 = sbr.rel (%p97) target = $region20
        $region19: #{deam_forward.3} parent=15 // pred_region
          %s100 = sand.u32 %s34, 1
          %s101 = scalar_lea.sflag [#allocation3], %s100
          %s102 = sand.u32 %s34, 1
          %s103 = smul.addr %s102, 128
          %s104 = scalar_lea.vmem [#allocation2], %s103
          %s105 = smul.u32 8, %s18
          %s107 = ssub.s32 2048, 2048
          %108 = vsyncadd %s101, %s107
          %s109 = smul.addr %s105, 2
          %s110 = smul.addr %s17, 32
          %s111 = sadd.s32 %s109, %s110
          %s112 = smul.addr %s111, 128
          %s113 = scalar_lea.hbm %s0, %s112
          %s114 = sshll.u32 %s104, 4
          %s115 = int_to_ptr.vmem [resolvable:$true] %s114
          %120 = dma.hbm_to_vmem [thread:$0]  %s113, 2048, %s115, %s101, 128, 128, 8
        $region20: #{deam_forward.3} parent=15 // pred_fallthru
          _
      $region16: #{deam_forward.3} parent=5 // pred_fallthru
        _
      %p121 = scmp.le.s32.totalorder 1, %s10
      %p122 = scmp.lt.s32.totalorder %s10, 5
      %p123 = pnand %p121, %p122
      %p124 = pneg %p123
      // Predicated region
      $region21: #{deam_forward.3} parent=5 // pred_check
        _
      $region22: #{deam_forward.3} parent=5 // pred_check_branch
        %126 = sbr.rel (%p123) target = $region24
      $region23: #{deam_forward.3} parent=5 // pred_region
        %s127 = ssub.s32 %s10, 1
        %s128 = sand.u32 %s37, 1
        %s129 = scalar_lea.sflag [#allocation3], %s128
        %s130 = sand.u32 %s37, 1
        %s131 = smul.addr %s130, 128
        %s132 = scalar_lea.vmem [#allocation2], %s131
        // Predicated region
        $region25: #{deam_forward.3} parent=23 // pred_check
          %p133 = pneg %p50
        $region26: #{deam_forward.3} parent=23 // pred_check_branch
          %135 = sbr.rel (%p133) target = $region28
        $region27: #{deam_forward.3} parent=23 // pred_region
          %136 = dma.done %s129, 2048
        $region28: #{deam_forward.3} parent=23 // pred_fallthru
          _
        %s137 = sand.u32 %s37, 1
        %s138 = scalar_lea.sflag [#allocation3], %s137
        %s139 = sand.u32 %s37, 1
        %s140 = smul.addr %s139, 128
        %s141 = scalar_lea.vmem [#allocation2], %s140
        %p142 = pneg %p50
        %p143 = pneg %p47
        %p144 = pneg %p78
        %p145 = pneg %p75
        %p146 = scmp.lt.s32.totalorder %s19, 1
        %s147 = scalar_select %p146, %s19, 1
        %p148 = scmp.lt.s32.totalorder %s20, 1
        %s149 = scalar_select %p148, %s20, 1
        %s150 = smul.addr %s147, 2
        %s151 = sadd.s32 %s149, %s150
        %s152 = smul.addr %s151, 2
        %s153 = scalar_lea.vmem %s1, %s152
        %s154 = smul.u32 8, %s20
        %p155 = scmp.lt.s32.totalorder %s19, 1
        %s156 = scalar_select %p155, %s19, 1
        %p157 = scmp.lt.s32.totalorder %s20, 1
        %s158 = scalar_select %p157, %s20, 1
        %s159 = smul.addr %s156, 2
        %s160 = sadd.s32 %s158, %s159
        %s161 = smul.addr %s160, 2
        %s162 = scalar_lea.vmem %s1, %s161
        %v163 = vld [vmem:[%s132] sm:$0xff]
        %v164 = vld [vmem:[%s132 + $0x8] sm:$0xff]
        %v165 = vld [vmem:[%s132 + $0x10] sm:$0xff]
        %v166 = vld [vmem:[%s132 + $0x18] sm:$0xff]
        %v167 = vld [vmem:[%s132 + $0x20] sm:$0xff]
        %v168 = vld [vmem:[%s132 + $0x28] sm:$0xff]
        %v169 = vld [vmem:[%s132 + $0x30] sm:$0xff]
        %v170 = vld [vmem:[%s132 + $0x38] sm:$0xff]
        %v171 = vld [vmem:[%s132 + $0x40] sm:$0xff]
        %v172 = vld [vmem:[%s132 + $0x48] sm:$0xff]
        %v173 = vld [vmem:[%s132 + $0x50] sm:$0xff]
        %v174 = vld [vmem:[%s132 + $0x58] sm:$0xff]
        %v175 = vld [vmem:[%s132 + $0x60] sm:$0xff]
        %v176 = vld [vmem:[%s132 + $0x68] sm:$0xff]
        %v177 = vld [vmem:[%s132 + $0x70] sm:$0xff]
        %v178 = vld [vmem:[%s132 + $0x78] sm:$0xff]
        %vm179 = vcmask 261120
        %v180 = vsel %vm179, %v163, 0.0
        %v181 = vsel %vm179, %v164, 0.0
        %v182 = vadd.f32 %v180, %v181
        %v183 = vsel %vm179, %v165, 0.0
        %v184 = vadd.f32 %v182, %v183
        %v185 = vsel %vm179, %v166, 0.0
        %v186 = vadd.f32 %v184, %v185
        %v187 = vsel %vm179, %v167, 0.0
        %v188 = vadd.f32 %v186, %v187
        %v189 = vsel %vm179, %v168, 0.0
        %v190 = vadd.f32 %v188, %v189
        %v191 = vsel %vm179, %v169, 0.0
        %v192 = vadd.f32 %v190, %v191
        %v193 = vsel %vm179, %v170, 0.0
        %v194 = vadd.f32 %v192, %v193
        %v195 = vsel %vm179, %v171, 0.0
        %v196 = vadd.f32 %v194, %v195
        %v197 = vsel %vm179, %v172, 0.0
        %v198 = vadd.f32 %v196, %v197
        %v199 = vsel %vm179, %v173, 0.0
        %v200 = vadd.f32 %v198, %v199
        %v201 = vsel %vm179, %v174, 0.0
        %v202 = vadd.f32 %v200, %v201
        %v203 = vsel %vm179, %v175, 0.0
        %v204 = vadd.f32 %v202, %v203
        %v205 = vsel %vm179, %v176, 0.0
        %v206 = vadd.f32 %v204, %v205
        %v207 = vsel %vm179, %v177, 0.0
        %v208 = vadd.f32 %v206, %v207
        %v209 = vsel %vm179, %v178, 0.0
        %v210 = vadd.f32 %v208, %v209
        %v211 = vrot.slane %v210, 4
        %v212 = vadd.f32 %v210, %v211
        %v213 = vrot.slane %v212, 2
        %v214 = vadd.f32 %v212, %v213
        %v215 = vrot.slane %v214, 1
        %v216 = vadd.f32 %v214, %v215
        %v217 = vsel %vm179, %v163, -inf
        %v218 = vsel %vm179, %v164, -inf
        %v219 = vsel %vm179, %v165, -inf
        %v220 = vsel %vm179, %v166, -inf
        %v221 = vsel %vm179, %v167, -inf
        %v222 = vmax.f32 %v217, %v221
        %v223 = vsel %vm179, %v168, -inf
        %v224 = vmax.f32 %v218, %v223
        %v225 = vsel %vm179, %v169, -inf
        %v226 = vmax.f32 %v219, %v225
        %v227 = vsel %vm179, %v170, -inf
        %v228 = vmax.f32 %v220, %v227
        %v229 = vsel %vm179, %v171, -inf
        %v230 = vmax.f32 %v222, %v229
        %v231 = vsel %vm179, %v172, -inf
        %v232 = vmax.f32 %v224, %v231
        %v233 = vsel %vm179, %v173, -inf
        %v234 = vmax.f32 %v226, %v233
        %v235 = vsel %vm179, %v174, -inf
        %v236 = vmax.f32 %v228, %v235
        %v237 = vsel %vm179, %v175, -inf
        %v238 = vmax.f32 %v230, %v237
        %v239 = vsel %vm179, %v176, -inf
        %v240 = vmax.f32 %v232, %v239
        %v241 = vsel %vm179, %v177, -inf
        %v242 = vmax.f32 %v234, %v241
        %v243 = vsel %vm179, %v178, -inf
        %v244 = vmax.f32 %v236, %v243
        %v245 = vmax.f32 %v238, %v240
        %v246 = vmax.f32 %v242, %v244
        %v247 = vmax.f32 %v245, %v246
        %v248 = vrot.slane %v247, 4
        %v249 = vmax.f32 %v247, %v248
        %v250 = vrot.slane %v249, 2
        %v251 = vmax.f32 %v249, %v250
        %v252 = vrot.slane %v251, 1
        %v253 = vmax.f32 %v251, %v252
        %vm254 = vcmask 1040384
        %v255 = vsel %vm254, %v216, %v253
        %vm256 = vcmask 254976
        %257 = vst.msk [vmem:[%s162] sm:$0x3] %vm256, %v255
        %p258 = scmp.lt.s32.totalorder %s19, 1
        %s259 = scalar_select %p258, %s19, 1
        %p260 = scmp.lt.s32.totalorder %s20, 1
        %s261 = scalar_select %p260, %s20, 1
        %s262 = smul.addr %s259, 2
        %s263 = sadd.s32 %s261, %s262
        %s264 = smul.addr %s263, 2
        %s265 = scalar_lea.vmem %s1, %s264
        // Predicated region
        $region29: #{deam_forward.3} parent=23 // pred_check
          %p266 = pneg %p75
        $region30: #{deam_forward.3} parent=23 // pred_check_branch
          %268 = sbr.rel (%p266) target = $region32
        $region31: #{deam_forward.3} parent=23 // pred_region
          _
        $region32: #{deam_forward.3} parent=23 // pred_fallthru
          _
      $region24: #{deam_forward.3} parent=5 // pred_fallthru
        _
      %p269 = scmp.le.s32.totalorder 2, %s10
      // Predicated region
      $region33: #{deam_forward.3} parent=5 // pred_check
        %p270 = pneg %p269
      $region34: #{deam_forward.3} parent=5 // pred_check_branch
        %272 = sbr.rel (%p270) target = $region36
      $region35: #{deam_forward.3} parent=5 // pred_region
        %s273 = ssub.s32 %s10, 2
        // Predicated region
        $region37: #{deam_forward.3} parent=35 // pred_check
          %p274 = pneg %p81
        $region38: #{deam_forward.3} parent=35 // pred_check_branch
          %276 = sbr.rel (%p274) target = $region40
        $region39: #{deam_forward.3} parent=35 // pred_region
          %p277 = scmp.lt.s32.totalorder %s21, 1
          %s278 = scalar_select %p277, %s21, 1
          %p279 = scmp.lt.s32.totalorder %s22, 1
          %s280 = scalar_select %p279, %s22, 1
          %s281 = smul.addr %s278, 2
          %s282 = sadd.s32 %s280, %s281
          %s283 = smul.addr %s282, 2
          %s284 = scalar_lea.vmem %s1, %s283
        $region40: #{deam_forward.3} parent=35 // pred_fallthru
          _
      $region36: #{deam_forward.3} parent=5 // pred_fallthru
        _
    $region6: #{deam_forward.3} parent=1 // loop_footer
      %s14 = sadd.s32 1, %s10
    $region7: #{deam_forward.3} parent=1 // loop_footer_branch
      %9 = sbr.rel target = $region3
    $region8: #{deam_forward.3} parent=1 // loop_exit
      _
    %285 = vsyncpa [#allocation3], 1
    %s286 = scalar_lea.sflag [#allocation3], 1
    %287 = vsyncpa %s286, 1

// kernel: tile.13
$region0: #{tile.13}
  #allocation0 [shape = 's32[1]{0}', space=sflag, size = 0x4, scoped, tag = 'scoped memory for tile.13']
  %s0 = inlined_call_operand.vmem [shape: f32[32], index: 0, kind: input, shape index: {}]
  %s1 = inlined_call_operand.vmem [shape: f32[16,32], index: 1, kind: output, shape index: {}]
  // Predicated region
  $region2: #{tile.13} parent=0 // pred_check
    _
  $region3: #{tile.13} parent=0 // pred_check_branch
    %3 = sbr.rel (0) target = $region5
  $region4: #{tile.13} parent=0 // pred_region
    _
  $region5: #{tile.13} parent=0 // pred_fallthru
    _
  %v4 = vld [vmem:[%s0] ss:$0 sm:$0xff]
  %5 = vst [vmem:[%s1] sm:$0xff] %v4
  %s6 = scalar_lea.vmem %s1, 8
  %7 = vst [vmem:[%s6] sm:$0xff] %v4

// kernel: tile.14
$region0: #{tile.14}
  %s0 = inlined_call_operand.vmem [shape: f32[16,32], index: 0, kind: input, shape index: {}]
  %s1 = inlined_call_operand.vmem [shape: f32[1,1,512], index: 1, kind: output, shape index: {}]
  $region1: #{tile.14} parent=0
    #allocation0 [shape = 'u8[16384]{0}', space=vmem, size = 0x4000, scoped, tag = 'scoped mem for output reshape']
    %v2 = vld [vmem:[%s0] ss:$4 sm:$0xf]
    %vm3 = vcmask 261120
    %4 = vst.msk [vmem:[#allocation0] ss:$8 sm:$0xf] %vm3, %v2
    %s5 = scalar_lea.vmem %s0, 3
    %v6 = vld [vmem:[%s5] ss:$4 sm:$0xf]
    %7 = vrot.lane.b32.xlu0 %v6, 96
    %v8 = vpop.permute.xlu0 %7
    %vm9 = vcmask 1048320
    %10 = vst.msk [vmem:[#allocation0] ss:$8 sm:$0xf] %vm9, %v8
    %s11 = scalar_lea.vmem %s0, 2
    %v12 = vld [vmem:[%s11] ss:$4 sm:$0xf]
    %13 = vrot.lane.b32.xlu0 %v12, 64
    %v14 = vpop.permute.xlu0 %13
    %vm15 = vcmask 785920
    %16 = vst.msk [vmem:[#allocation0] ss:$8 sm:$0xf] %vm15, %v14
    %s17 = scalar_lea.vmem %s0, 1
    %v18 = vld [vmem:[%s17] ss:$4 sm:$0xf]
    %19 = vrot.lane.b32.xlu0 %v18, 32
    %v20 = vpop.permute.xlu0 %19
    %vm21 = vcmask 523520
    %22 = vst.msk [vmem:[#allocation0] ss:$8 sm:$0xf] %vm21, %v20
    %s24 = sshll.u32 1, 1
    %s25 = ssub.s32 %s24, 1
    %v27 = vld [vmem:[#allocation0] sm:%s25]
    %s28 = sshll.u32 1, 1
    %s29 = ssub.s32 %s28, 1
    %30 = vst [vmem:[%s1] sm:%s29] %v27
    %s31 = scalar_lea.vmem [#allocation0], 8
    %v32 = vld [vmem:[%s31] sm:%s25]
    %s33 = sshll.u32 1, 1
    %s34 = ssub.s32 %s33, 1
    %s35 = scalar_lea.vmem %s1, 1
    %36 = vst [vmem:[%s35] sm:%s34] %v32
    %s37 = scalar_lea.vmem [#allocation0], 16
    %v38 = vld [vmem:[%s37] sm:%s25]
    %s39 = sshll.u32 1, 1
    %s40 = ssub.s32 %s39, 1
    %s41 = smul.addr 1, 2
    %s42 = scalar_lea.vmem %s1, %s41
    %43 = vst [vmem:[%s42] sm:%s40] %v38
    %s44 = scalar_lea.vmem [#allocation0], 24
    %v45 = vld [vmem:[%s44] sm:%s25]
    %s46 = sshll.u32 1, 1
    %s47 = ssub.s32 %s46, 1
    %s48 = smul.addr 1, 3
    %s49 = scalar_lea.vmem %s1, %s48
    %50 = vst [vmem:[%s49] sm:%s47] %v45

// kernel: deam_forward.5
$region0: #{deam_forward.5}
  #allocation0 [shape = 'u32[]', space=smem, size = 0x4, offset = 0x4, fixed_abs, tag = 'smem constant byte address 0x4 - core index']
  #allocation1 [shape = 'u32[144,128]{1,0:T(1,128)}', space=vmem, size = 0x12000, scoped, tag = 'internal scratch']
  %s0 = inlined_call_operand.vmem [shape: bf16[2,16,512], index: 0, kind: input, shape index: {}, may-alias: {0,3}]
  %s1 = inlined_call_operand.vmem [shape: f32[1,1,512], index: 1, kind: input, shape index: {}]
  %s2 = inlined_call_operand.vmem [shape: f32[1,1,512], index: 2, kind: input, shape index: {}]
  %s3 = inlined_call_operand.vmem [shape: bf16[2,16,512], index: 3, kind: output, shape index: {}, may-alias: {0,3}]
  %s4 = sld [smem:[#allocation0]]
  $region45: #{deam_forward.5} parent=0
    _
  %s6 = ssub.s32 1, %s4
  %s7 = scalar_select 0, %s6, %s4
  loop: start=0, step=1, limit=4
  $region2: #{deam_forward.5} parent=0 // loop_pre_header
    _
  $region3: #{deam_forward.5} parent=0 // loop_header
    %s9 = sphi 0, %s13
    %p10 = scmp.ge.s32.totalorder %s9, 4
    %s16 = sphi 0, %s28
    %s17 = sphi 0, %s24
    %s18 = sphi 0, %s16
    %s19 = sphi 0, %s17
    %s20 = sphi 0, %s18
    %s21 = sphi 0, %s19
    %s33 = sphi 0, %s35
    %s36 = sphi 0, %s33
    %s37 = sphi 0, %s36
    %s53 = sphi 0, %s37
    %s57 = sphi 0, %s57
    %s59 = sphi 0, %s57
    %s60 = sphi 0, %s59
    %s74 = sphi 0, %s60
    %s78 = sphi 0, %s78
    %s80 = sphi 0, %s78
    %s81 = sphi 0, %s80
    %s95 = sphi 0, %s81
    %s103 = sphi 0, %s105
    %s106 = sphi 0, %s103
    %s107 = sphi 0, %s106
    %s123 = sphi 0, %s107
  $region4: #{deam_forward.5} parent=0 // loop_header_branch
    %12 = sbr.rel (%p10) target = $region8
  $region5: #{deam_forward.5} parent=0 // loop_body
    %s14 = ssub.s32 %s9, 1
    %s15 = ssub.s32 %s9, 2
    %s22 = sadd.s32 1, %s17
    %p23 = scmp.ge.s32.totalorder %s22, 1
    %s24 = scalar_select %p23, 0, %s22
    %s25 = sadd.s32 1, %s16
    %s26 = scalar_select %p23, %s25, %s16
    %p27 = scmp.ge.s32.totalorder %s26, 2
    %s28 = scalar_select %p27, 0, %s26
    %s29 = ssub.s32 %s16, %s28
    %s30 = ssub.s32 %s17, %s24
    %s31 = sor.u32 %s29, %s30
    %p32 = scmp.eq.s32.totalorder %s31, 0
    %s34 = sadd.s32 %s33, 1
    %s35 = scalar_select %p32, %s33, %s34
    %p38 = pneg %p32
    %p39 = scmp.eq.s32.totalorder %s9, 1
    %p40 = por %p38, %p39
    %p41 = scmp.ne.s32.totalorder %s33, %s36
    %p42 = scmp.eq.s32.totalorder %s9, 0
    %p43 = por %p41, %p42
    %p44 = scmp.ne.s32.totalorder %s33, %s36
    %p45 = scmp.eq.s32.totalorder %s14, 1
    %p46 = por %p44, %p45
    %p47 = scmp.ne.s32.totalorder %s36, %s37
    %p48 = scmp.eq.s32.totalorder %s14, 0
    %p49 = por %p47, %p48
    %p50 = scmp.ne.s32.totalorder %s36, %s37
    %p51 = scmp.eq.s32.totalorder %s15, 1
    %p52 = por %p50, %p51
    %p54 = scmp.ne.s32.totalorder %s37, %s53
    %p55 = scmp.eq.s32.totalorder %s15, 0
    %p56 = por %p54, %p55
    %s58 = sadd.s32 %s57, 1
    %p61 = scmp.eq.s32.totalorder %s9, 1
    %p62 = scmp.ne.s32.totalorder %s57, %s59
    %p63 = scmp.eq.s32.totalorder %s9, 0
    %p64 = por %p62, %p63
    %p65 = scmp.ne.s32.totalorder %s57, %s59
    %p66 = scmp.eq.s32.totalorder %s14, 1
    %p67 = por %p65, %p66
    %p68 = scmp.ne.s32.totalorder %s59, %s60
    %p69 = scmp.eq.s32.totalorder %s14, 0
    %p70 = por %p68, %p69
    %p71 = scmp.ne.s32.totalorder %s59, %s60
    %p72 = scmp.eq.s32.totalorder %s15, 1
    %p73 = por %p71, %p72
    %p75 = scmp.ne.s32.totalorder %s60, %s74
    %p76 = scmp.eq.s32.totalorder %s15, 0
    %p77 = por %p75, %p76
    %s79 = sadd.s32 %s78, 1
    %p82 = scmp.eq.s32.totalorder %s9, 1
    %p83 = scmp.ne.s32.totalorder %s78, %s80
    %p84 = scmp.eq.s32.totalorder %s9, 0
    %p85 = por %p83, %p84
    %p86 = scmp.ne.s32.totalorder %s78, %s80
    %p87 = scmp.eq.s32.totalorder %s14, 1
    %p88 = por %p86, %p87
    %p89 = scmp.ne.s32.totalorder %s80, %s81
    %p90 = scmp.eq.s32.totalorder %s14, 0
    %p91 = por %p89, %p90
    %p92 = scmp.ne.s32.totalorder %s80, %s81
    %p93 = scmp.eq.s32.totalorder %s15, 1
    %p94 = por %p92, %p93
    %p96 = scmp.ne.s32.totalorder %s81, %s95
    %p97 = scmp.eq.s32.totalorder %s15, 0
    %p98 = por %p96, %p97
    %s99 = ssub.s32 %s16, %s28
    %s100 = ssub.s32 %s17, %s24
    %s101 = sor.u32 %s99, %s100
    %p102 = scmp.eq.s32.totalorder %s101, 0
    %s104 = sadd.s32 %s103, 1
    %s105 = scalar_select %p102, %s103, %s104
    %p108 = pneg %p102
    %p109 = scmp.eq.s32.totalorder %s9, 1
    %p110 = por %p108, %p109
    %p111 = scmp.ne.s32.totalorder %s103, %s106
    %p112 = scmp.eq.s32.totalorder %s9, 0
    %p113 = por %p111, %p112
    %p114 = scmp.ne.s32.totalorder %s103, %s106
    %p115 = scmp.eq.s32.totalorder %s14, 1
    %p116 = por %p114, %p115
    %p117 = scmp.ne.s32.totalorder %s106, %s107
    %p118 = scmp.eq.s32.totalorder %s14, 0
    %p119 = por %p117, %p118
    %p120 = scmp.ne.s32.totalorder %s106, %s107
    %p121 = scmp.eq.s32.totalorder %s15, 1
    %p122 = por %p120, %p121
    %p124 = scmp.ne.s32.totalorder %s107, %s123
    %p125 = scmp.eq.s32.totalorder %s15, 0
    %p126 = por %p124, %p125
    %p127 = scmp.le.s32.totalorder 1, %s9
    %p128 = scmp.lt.s32.totalorder %s9, 3
    %p129 = pnand %p127, %p128
    %p130 = pneg %p129
    // Predicated region
    $region9: #{deam_forward.5} parent=5 // pred_check
      _
    $region10: #{deam_forward.5} parent=5 // pred_check_branch
      %132 = sbr.rel (%p129) target = $region12
    $region11: #{deam_forward.5} parent=5 // pred_region
      %s133 = ssub.s32 %s9, 1
      // Predicated region
      $region13: #{deam_forward.5} parent=11 // pred_check
        %p134 = pneg %p70
      $region14: #{deam_forward.5} parent=11 // pred_check_branch
        %136 = sbr.rel (%p134) target = $region16
      $region15: #{deam_forward.5} parent=11 // pred_region
        _
      $region16: #{deam_forward.5} parent=11 // pred_fallthru
        _
      // Predicated region
      $region17: #{deam_forward.5} parent=11 // pred_check
        %p137 = pneg %p91
      $region18: #{deam_forward.5} parent=11 // pred_check_branch
        %139 = sbr.rel (%p137) target = $region20
      $region19: #{deam_forward.5} parent=11 // pred_region
        _
      $region20: #{deam_forward.5} parent=11 // pred_fallthru
        _
    $region12: #{deam_forward.5} parent=5 // pred_fallthru
      _
    %p140 = scmp.lt.s32.totalorder %s9, 2
    // Predicated region
    $region21: #{deam_forward.5} parent=5 // pred_check
      %p141 = pneg %p140
    $region22: #{deam_forward.5} parent=5 // pred_check_branch
      %143 = sbr.rel (%p141) target = $region24
    $region23: #{deam_forward.5} parent=5 // pred_region
      // Predicated region
      $region25: #{deam_forward.5} parent=23 // pred_check
        %p144 = pneg %p43
      $region26: #{deam_forward.5} parent=23 // pred_check_branch
        %146 = sbr.rel (%p144) target = $region28
      $region27: #{deam_forward.5} parent=23 // pred_region
        %s147 = smul.u32 2, %s17
        %p148 = scmp.lt.s32.totalorder %s16, 1
        %s149 = scalar_select %p148, %s16, 1
        %p150 = scmp.lt.s32.totalorder %s147, 1
        %s151 = scalar_select %p150, %s147, 1
        %s152 = smul.addr %s151, 4
        %s153 = smul.addr %s149, 8
        %s154 = sadd.s32 %s152, %s153
        %s155 = smul.addr %s154, 4
        %s156 = scalar_lea.vmem %s0, %s155
        %s157 = smul.u32 2, %s17
      $region28: #{deam_forward.5} parent=23 // pred_fallthru
        _
    $region24: #{deam_forward.5} parent=5 // pred_fallthru
      _
    %p158 = scmp.le.s32.totalorder 1, %s9
    %p159 = scmp.lt.s32.totalorder %s9, 3
    %p160 = pnand %p158, %p159
    %p161 = pneg %p160
    // Predicated region
    $region29: #{deam_forward.5} parent=5 // pred_check
      _
    $region30: #{deam_forward.5} parent=5 // pred_check_branch
      %163 = sbr.rel (%p160) target = $region32
    $region31: #{deam_forward.5} parent=5 // pred_region
      %s164 = ssub.s32 %s9, 1
      %s165 = smul.u32 2, %s19
      %p166 = scmp.lt.s32.totalorder %s18, 1
      %s167 = scalar_select %p166, %s18, 1
      %p168 = scmp.lt.s32.totalorder %s165, 1
      %s169 = scalar_select %p168, %s165, 1
      %s170 = smul.addr %s169, 4
      %s171 = smul.addr %s167, 8
      %s172 = sadd.s32 %s170, %s171
      %s173 = smul.addr %s172, 4
      %s174 = scalar_lea.vmem %s0, %s173
      %p175 = pneg %p49
      %p176 = pneg %p46
      %p177 = pneg %p70
      %p178 = pneg %p67
      %p179 = pneg %p91
      %p180 = pneg %p88
      %p181 = pneg %p119
      %p182 = pneg %p116
      %s183 = smul.u32 2, %s19
      %p184 = scmp.lt.s32.totalorder %s18, 1
      %s185 = scalar_select %p184, %s18, 1
      %p186 = scmp.lt.s32.totalorder %s183, 1
      %s187 = scalar_select %p186, %s183, 1
      %s188 = smul.addr %s187, 4
      %s189 = smul.addr %s185, 8
      %s190 = sadd.s32 %s188, %s189
      %s191 = smul.addr %s190, 4
      %s192 = scalar_lea.vmem %s3, %s191
      %s193 = smul.u32 2, %s19
      %p194 = scmp.lt.s32.totalorder %s18, 1
      %s195 = scalar_select %p194, %s18, 1
      %p196 = scmp.lt.s32.totalorder %s193, 1
      %s197 = scalar_select %p196, %s193, 1
      %s198 = smul.addr %s197, 4
      %s199 = smul.addr %s195, 8
      %s200 = sadd.s32 %s198, %s199
      %s201 = smul.addr %s200, 4
      %s202 = scalar_lea.vmem %s0, %s201
      %s203 = smul.u32 2, %s19
      %s204 = smul.u32 2, %s19
      %p205 = scmp.lt.s32.totalorder %s18, 1
      %s206 = scalar_select %p205, %s18, 1
      %p207 = scmp.lt.s32.totalorder %s204, 1
      %s208 = scalar_select %p207, %s204, 1
      %s209 = smul.addr %s208, 4
      %s210 = smul.addr %s206, 8
      %s211 = sadd.s32 %s209, %s210
      %s212 = smul.addr %s211, 4
      %s213 = scalar_lea.vmem %s3, %s212
      %s214 = smul.u32 2, %s19
      %v215 = vld [vmem:[%s202] sm:$0xff]
      %v216 = vld [vmem:[%s202 + $0x8] sm:$0xff]
      %v217 = vld [vmem:[%s202 + $0x10] sm:$0xff]
      %v218 = vld [vmem:[%s202 + $0x18] sm:$0xff]
      %v219 = vunpack.c.l.bf16 %v215
      %v220 = vunpack.c.h.bf16 %v215
      %v221 = vunpack.c.l.bf16 %v216
      %v222 = vunpack.c.h.bf16 %v216
      %v223 = vunpack.c.l.bf16 %v217
      %v224 = vunpack.c.h.bf16 %v217
      %v225 = vunpack.c.l.bf16 %v218
      %v226 = vunpack.c.h.bf16 %v218
      %v227 = vld [vmem:[%s1] sm:$0xf]
      %v229 = vlaneseq
      %v230 = vshrl.u32 %v229, 7
      %v231 = vsub.s32 0, %v230
      %v232 = vrot.slane %v227, %v231
      %v233 = vlaneseq
      %v234 = vshrl.u32 %v233, 7
      %v235 = vsub.s32 1, %v234
      %v236 = vrot.slane %v227, %v235
      %v237 = vlaneseq
      %v238 = vshrl.u32 %v237, 7
      %v239 = vsub.s32 2, %v238
      %v240 = vrot.slane %v227, %v239
      %v241 = vlaneseq
      %v242 = vshrl.u32 %v241, 7
      %v243 = vsub.s32 3, %v242
      %v244 = vrot.slane %v227, %v243
      %v249 = vmul.f32 %v219, %v232
      %v250 = vmul.f32 %v220, %v236
      %v251 = vmul.f32 %v221, %v240
      %v252 = vmul.f32 %v222, %v244
      %v253 = vmul.f32 %v223, %v232
      %v254 = vmul.f32 %v224, %v236
      %v255 = vmul.f32 %v225, %v240
      %v256 = vmul.f32 %v226, %v244
      %v257 = vld [vmem:[%s2] sm:$0xf]
      %v259 = vlaneseq
      %v260 = vshrl.u32 %v259, 7
      %v261 = vsub.s32 0, %v260
      %v262 = vrot.slane %v257, %v261
      %v263 = vlaneseq
      %v264 = vshrl.u32 %v263, 7
      %v265 = vsub.s32 1, %v264
      %v266 = vrot.slane %v257, %v265
      %v267 = vlaneseq
      %v268 = vshrl.u32 %v267, 7
      %v269 = vsub.s32 2, %v268
      %v270 = vrot.slane %v257, %v269
      %v271 = vlaneseq
      %v272 = vshrl.u32 %v271, 7
      %v273 = vsub.s32 3, %v272
      %v274 = vrot.slane %v257, %v273
      %v279 = vadd.f32 %v249, %v262
      %v280 = vadd.f32 %v250, %v266
      %v281 = vadd.f32 %v251, %v270
      %v282 = vadd.f32 %v252, %v274
      %v283 = vadd.f32 %v253, %v262
      %v284 = vadd.f32 %v254, %v266
      %v285 = vadd.f32 %v255, %v270
      %v286 = vadd.f32 %v256, %v274
      %v287 = vmax.f32 %v279, 0.0
      %v288 = vmax.f32 %v280, 0.0
      %v289 = vmax.f32 %v281, 0.0
      %v290 = vmax.f32 %v282, 0.0
      %v291 = vmax.f32 %v283, 0.0
      %v292 = vmax.f32 %v284, 0.0
      %v293 = vmax.f32 %v285, 0.0
      %v294 = vmax.f32 %v286, 0.0
      %v295 = vpack.c.bf16 %v291, %v287
      %v296 = vpack.c.bf16 %v292, %v288
      %v297 = vpack.c.bf16 %v293, %v289
      %v298 = vpack.c.bf16 %v294, %v290
      %v303 = vunpack.c.l.b16 %v295
      %v304 = vunpack.c.l.b16 %v296
      %v305 = vunpack.c.l.b16 %v297
      %v306 = vunpack.c.l.b16 %v298
      %v307 = vunpack.c.h.b16 %v295
      %v308 = vunpack.c.h.b16 %v296
      %v309 = vunpack.c.h.b16 %v297
      %v310 = vunpack.c.h.b16 %v298
      %v311 = vpack.c.b16 %v304, %v303
      %v312 = vpack.c.b16 %v306, %v305
      %v313 = vpack.c.b16 %v308, %v307
      %v314 = vpack.c.b16 %v310, %v309
      %319 = vst [vmem:[%s213] sm:$0xff] %v311
      %320 = vst [vmem:[%s213 + $0x8] sm:$0xff] %v312
      %321 = vst [vmem:[%s213 + $0x10] sm:$0xff] %v313
      %322 = vst [vmem:[%s213 + $0x18] sm:$0xff] %v314
      %s323 = smul.u32 2, %s19
      %p324 = scmp.lt.s32.totalorder %s18, 1
      %s325 = scalar_select %p324, %s18, 1
      %p326 = scmp.lt.s32.totalorder %s323, 1
      %s327 = scalar_select %p326, %s323, 1
      %s328 = smul.addr %s327, 4
      %s329 = smul.addr %s325, 8
      %s330 = sadd.s32 %s328, %s329
      %s331 = smul.addr %s330, 4
      %s332 = scalar_lea.vmem %s3, %s331
      // Predicated region
      $region33: #{deam_forward.5} parent=31 // pred_check
        %p333 = pneg %p116
      $region34: #{deam_forward.5} parent=31 // pred_check_branch
        %335 = sbr.rel (%p333) target = $region36
      $region35: #{deam_forward.5} parent=31 // pred_region
        %s336 = smul.u32 2, %s19
      $region36: #{deam_forward.5} parent=31 // pred_fallthru
        _
    $region32: #{deam_forward.5} parent=5 // pred_fallthru
      _
    %p337 = scmp.le.s32.totalorder 2, %s9
    // Predicated region
    $region37: #{deam_forward.5} parent=5 // pred_check
      %p338 = pneg %p337
    $region38: #{deam_forward.5} parent=5 // pred_check_branch
      %340 = sbr.rel (%p338) target = $region40
    $region39: #{deam_forward.5} parent=5 // pred_region
      %s341 = ssub.s32 %s9, 2
      // Predicated region
      $region41: #{deam_forward.5} parent=39 // pred_check
        %p342 = pneg %p122
      $region42: #{deam_forward.5} parent=39 // pred_check_branch
        %344 = sbr.rel (%p342) target = $region44
      $region43: #{deam_forward.5} parent=39 // pred_region
        %s345 = smul.u32 2, %s21
        %p346 = scmp.lt.s32.totalorder %s20, 1
        %s347 = scalar_select %p346, %s20, 1
        %p348 = scmp.lt.s32.totalorder %s345, 1
        %s349 = scalar_select %p348, %s345, 1
        %s350 = smul.addr %s349, 4
        %s351 = smul.addr %s347, 8
        %s352 = sadd.s32 %s350, %s351
        %s353 = smul.addr %s352, 4
        %s354 = scalar_lea.vmem %s3, %s353
      $region44: #{deam_forward.5} parent=39 // pred_fallthru
        _
    $region40: #{deam_forward.5} parent=5 // pred_fallthru
      _
  $region6: #{deam_forward.5} parent=0 // loop_footer
    %s13 = sadd.s32 1, %s9
  $region7: #{deam_forward.5} parent=0 // loop_footer_branch
    %8 = sbr.rel target = $region3
  $region8: #{deam_forward.5} parent=0 // loop_exit
    _

// kernel: deam_forward.4
$region0: #{deam_forward.4}
  #allocation0 [shape = 'u32[]', space=smem, size = 0x4, offset = 0x4, fixed_abs, tag = 'smem constant byte address 0x4 - core index']
  #allocation1 [shape = 'u32[144,128]{1,0:T(1,128)}', space=vmem, size = 0x12000, scoped, tag = 'internal scratch']
  %s0 = inlined_call_operand.vmem [shape: bf16[2,2,10,16,32], index: 0, kind: input, shape index: {}]
  %s1 = inlined_call_operand.vmem [shape: bf16[2,288,32], index: 1, kind: input, shape index: {}]
  %s2 = inlined_call_operand.vmem [shape: bf16[2,16,16,32], index: 2, kind: output, shape index: {0}]
  %s3 = inlined_call_operand.vmem [shape: f32[2,2,2,32], index: 3, kind: output, shape index: {1}]
  %4 = xla_tuple %s2, %s3
  %s5 = sld [smem:[#allocation0]]
  $region49: #{deam_forward.4} parent=0
    _
  %s7 = ssub.s32 1, %s5
  %s8 = scalar_select 0, %s7, %s5
  loop: start=0, step=1, limit=6
  $region2: #{deam_forward.4} parent=0 // loop_pre_header
    _
  $region3: #{deam_forward.4} parent=0 // loop_header
    %s10 = sphi 0, %s14
    %p11 = scmp.ge.s32.totalorder %s10, 6
    %s17 = sphi 0, %s29
    %s18 = sphi 0, %s25
    %s19 = sphi 0, %s17
    %s20 = sphi 0, %s18
    %s21 = sphi 0, %s19
    %s22 = sphi 0, %s20
    %s34 = sphi 0, %s36
    %s37 = sphi 0, %s34
    %s38 = sphi 0, %s37
    %s54 = sphi 0, %s38
    %s60 = sphi 0, %s62
    %s63 = sphi 0, %s60
    %s64 = sphi 0, %s63
    %s80 = sphi 0, %s64
    %s88 = sphi 0, %s90
    %s91 = sphi 0, %s88
    %s92 = sphi 0, %s91
    %s108 = sphi 0, %s92
    %s116 = sphi 0, %s118
    %s119 = sphi 0, %s116
    %s120 = sphi 0, %s119
    %s136 = sphi 0, %s120
  $region4: #{deam_forward.4} parent=0 // loop_header_branch
    %13 = sbr.rel (%p11) target = $region8
  $region5: #{deam_forward.4} parent=0 // loop_body
    %s15 = ssub.s32 %s10, 1
    %s16 = ssub.s32 %s10, 2
    %s23 = sadd.s32 1, %s18
    %p24 = scmp.ge.s32.totalorder %s23, 2
    %s25 = scalar_select %p24, 0, %s23
    %s26 = sadd.s32 1, %s17
    %s27 = scalar_select %p24, %s26, %s17
    %p28 = scmp.ge.s32.totalorder %s27, 2
    %s29 = scalar_select %p28, 0, %s27
    %s30 = ssub.s32 %s17, %s29
    %s31 = ssub.s32 %s18, %s25
    %s32 = sor.u32 %s30, %s31
    %p33 = scmp.eq.s32.totalorder %s32, 0
    %s35 = sadd.s32 %s34, 1
    %s36 = scalar_select %p33, %s34, %s35
    %p39 = pneg %p33
    %p40 = scmp.eq.s32.totalorder %s10, 3
    %p41 = por %p39, %p40
    %p42 = scmp.ne.s32.totalorder %s34, %s37
    %p43 = scmp.eq.s32.totalorder %s10, 0
    %p44 = por %p42, %p43
    %p45 = scmp.ne.s32.totalorder %s34, %s37
    %p46 = scmp.eq.s32.totalorder %s15, 3
    %p47 = por %p45, %p46
    %p48 = scmp.ne.s32.totalorder %s37, %s38
    %p49 = scmp.eq.s32.totalorder %s15, 0
    %p50 = por %p48, %p49
    %p51 = scmp.ne.s32.totalorder %s37, %s38
    %p52 = scmp.eq.s32.totalorder %s16, 3
    %p53 = por %p51, %p52
    %p55 = scmp.ne.s32.totalorder %s38, %s54
    %p56 = scmp.eq.s32.totalorder %s16, 0
    %p57 = por %p55, %p56
    %s58 = ssub.s32 %s17, %s29
    %p59 = scmp.eq.s32.totalorder %s58, 0
    %s61 = sadd.s32 %s60, 1
    %s62 = scalar_select %p59, %s60, %s61
    %p65 = pneg %p59
    %p66 = scmp.eq.s32.totalorder %s10, 3
    %p67 = por %p65, %p66
    %p68 = scmp.ne.s32.totalorder %s60, %s63
    %p69 = scmp.eq.s32.totalorder %s10, 0
    %p70 = por %p68, %p69
    %p71 = scmp.ne.s32.totalorder %s60, %s63
    %p72 = scmp.eq.s32.totalorder %s15, 3
    %p73 = por %p71, %p72
    %p74 = scmp.ne.s32.totalorder %s63, %s64
    %p75 = scmp.eq.s32.totalorder %s15, 0
    %p76 = por %p74, %p75
    %p77 = scmp.ne.s32.totalorder %s63, %s64
    %p78 = scmp.eq.s32.totalorder %s16, 3
    %p79 = por %p77, %p78
    %p81 = scmp.ne.s32.totalorder %s64, %s80
    %p82 = scmp.eq.s32.totalorder %s16, 0
    %p83 = por %p81, %p82
    %s84 = ssub.s32 %s17, %s29
    %s85 = ssub.s32 %s18, %s25
    %s86 = sor.u32 %s84, %s85
    %p87 = scmp.eq.s32.totalorder %s86, 0
    %s89 = sadd.s32 %s88, 1
    %s90 = scalar_select %p87, %s88, %s89
    %p93 = pneg %p87
    %p94 = scmp.eq.s32.totalorder %s10, 3
    %p95 = por %p93, %p94
    %p96 = scmp.ne.s32.totalorder %s88, %s91
    %p97 = scmp.eq.s32.totalorder %s10, 0
    %p98 = por %p96, %p97
    %p99 = scmp.ne.s32.totalorder %s88, %s91
    %p100 = scmp.eq.s32.totalorder %s15, 3
    %p101 = por %p99, %p100
    %p102 = scmp.ne.s32.totalorder %s91, %s92
    %p103 = scmp.eq.s32.totalorder %s15, 0
    %p104 = por %p102, %p103
    %p105 = scmp.ne.s32.totalorder %s91, %s92
    %p106 = scmp.eq.s32.totalorder %s16, 3
    %p107 = por %p105, %p106
    %p109 = scmp.ne.s32.totalorder %s92, %s108
    %p110 = scmp.eq.s32.totalorder %s16, 0
    %p111 = por %p109, %p110
    %s112 = ssub.s32 %s17, %s29
    %s113 = ssub.s32 %s18, %s25
    %s114 = sor.u32 %s112, %s113
    %p115 = scmp.eq.s32.totalorder %s114, 0
    %s117 = sadd.s32 %s116, 1
    %s118 = scalar_select %p115, %s116, %s117
    %p121 = pneg %p115
    %p122 = scmp.eq.s32.totalorder %s10, 3
    %p123 = por %p121, %p122
    %p124 = scmp.ne.s32.totalorder %s116, %s119
    %p125 = scmp.eq.s32.totalorder %s10, 0
    %p126 = por %p124, %p125
    %p127 = scmp.ne.s32.totalorder %s116, %s119
    %p128 = scmp.eq.s32.totalorder %s15, 3
    %p129 = por %p127, %p128
    %p130 = scmp.ne.s32.totalorder %s119, %s120
    %p131 = scmp.eq.s32.totalorder %s15, 0
    %p132 = por %p130, %p131
    %p133 = scmp.ne.s32.totalorder %s119, %s120
    %p134 = scmp.eq.s32.totalorder %s16, 3
    %p135 = por %p133, %p134
    %p137 = scmp.ne.s32.totalorder %s120, %s136
    %p138 = scmp.eq.s32.totalorder %s16, 0
    %p139 = por %p137, %p138
    %p140 = scmp.le.s32.totalorder 1, %s10
    %p141 = scmp.lt.s32.totalorder %s10, 5
    %p142 = pnand %p140, %p141
    %p143 = pneg %p142
    // Predicated region
    $region9: #{deam_forward.4} parent=5 // pred_check
      _
    $region10: #{deam_forward.4} parent=5 // pred_check_branch
      %145 = sbr.rel (%p142) target = $region12
    $region11: #{deam_forward.4} parent=5 // pred_region
      %s146 = ssub.s32 %s10, 1
    $region12: #{deam_forward.4} parent=5 // pred_fallthru
      _
    %p147 = scmp.lt.s32.totalorder %s10, 4
    // Predicated region
    $region13: #{deam_forward.4} parent=5 // pred_check
      %p148 = pneg %p147
    $region14: #{deam_forward.4} parent=5 // pred_check_branch
      %150 = sbr.rel (%p148) target = $region16
    $region15: #{deam_forward.4} parent=5 // pred_region
      // Predicated region
      $region17: #{deam_forward.4} parent=15 // pred_check
        %p151 = pneg %p44
      $region18: #{deam_forward.4} parent=15 // pred_check_branch
        %153 = sbr.rel (%p151) target = $region20
      $region19: #{deam_forward.4} parent=15 // pred_region
        %p154 = scmp.lt.s32.totalorder %s17, 1
        %s155 = scalar_select %p154, %s17, 1
        %p156 = scmp.lt.s32.totalorder %s18, 1
        %s157 = scalar_select %p156, %s18, 1
        %s158 = smul.addr %s157, 20
        %s159 = smul.addr %s155, 40
        %s160 = sadd.s32 %s158, %s159
        %s161 = smul.addr %s160, 4
        %s162 = scalar_lea.vmem %s0, %s161
      $region20: #{deam_forward.4} parent=15 // pred_fallthru
        _
      // Predicated region
      $region21: #{deam_forward.4} parent=15 // pred_check
        %p163 = pneg %p70
      $region22: #{deam_forward.4} parent=15 // pred_check_branch
        %165 = sbr.rel (%p163) target = $region24
      $region23: #{deam_forward.4} parent=15 // pred_region
        %p166 = scmp.lt.s32.totalorder %s17, 1
        %s167 = scalar_select %p166, %s17, 1
        %s168 = smul.addr %s167, 36
        %s169 = smul.addr %s168, 4
        %s170 = scalar_lea.vmem %s1, %s169
      $region24: #{deam_forward.4} parent=15 // pred_fallthru
        _
    $region16: #{deam_forward.4} parent=5 // pred_fallthru
      _
    %p171 = scmp.le.s32.totalorder 1, %s10
    %p172 = scmp.lt.s32.totalorder %s10, 5
    %p173 = pnand %p171, %p172
    %p174 = pneg %p173
    // Predicated region
    $region25: #{deam_forward.4} parent=5 // pred_check
      _
    $region26: #{deam_forward.4} parent=5 // pred_check_branch
      %176 = sbr.rel (%p173) target = $region28
    $region27: #{deam_forward.4} parent=5 // pred_region
      %s177 = ssub.s32 %s10, 1
      %p178 = scmp.lt.s32.totalorder %s19, 1
      %s179 = scalar_select %p178, %s19, 1
      %p180 = scmp.lt.s32.totalorder %s20, 1
      %s181 = scalar_select %p180, %s20, 1
      %s182 = smul.addr %s181, 20
      %s183 = smul.addr %s179, 40
      %s184 = sadd.s32 %s182, %s183
      %s185 = smul.addr %s184, 4
      %s186 = scalar_lea.vmem %s0, %s185
      %p187 = pneg %p50
      %p188 = pneg %p47
      %p189 = scmp.lt.s32.totalorder %s19, 1
      %s190 = scalar_select %p189, %s19, 1
      %s191 = smul.addr %s190, 36
      %s192 = smul.addr %s191, 4
      %s193 = scalar_lea.vmem %s1, %s192
      %p194 = pneg %p76
      %p195 = pneg %p73
      %p196 = pneg %p104
      %p197 = pneg %p101
      %s198 = smul.u32 8, %s20
      %p199 = scmp.lt.s32.totalorder %s19, 1
      %s200 = scalar_select %p199, %s19, 1
      %p201 = scmp.lt.s32.totalorder %s198, 15
      %s202 = scalar_select %p201, %s198, 15
      %s203 = smul.addr %s202, 2
      %s204 = smul.addr %s200, 32
      %s205 = sadd.s32 %s203, %s204
      %s206 = smul.addr %s205, 4
      %s207 = scalar_lea.vmem %s2, %s206
      %p208 = pneg %p132
      %p209 = pneg %p129
      %p210 = scmp.lt.s32.totalorder %s19, 1
      %s211 = scalar_select %p210, %s19, 1
      %p212 = scmp.lt.s32.totalorder %s20, 1
      %s213 = scalar_select %p212, %s20, 1
      %s214 = smul.addr %s211, 2
      %s215 = sadd.s32 %s213, %s214
      %s216 = smul.addr %s215, 2
      %s217 = scalar_lea.vmem %s3, %s216
      %p218 = scmp.lt.s32.totalorder %s19, 1
      %s219 = scalar_select %p218, %s19, 1
      %p220 = scmp.lt.s32.totalorder %s20, 1
      %s221 = scalar_select %p220, %s20, 1
      %s222 = smul.addr %s221, 20
      %s223 = smul.addr %s219, 40
      %s224 = sadd.s32 %s222, %s223
      %s225 = smul.addr %s224, 4
      %s226 = scalar_lea.vmem %s0, %s225
      %p227 = scmp.lt.s32.totalorder %s19, 1
      %s228 = scalar_select %p227, %s19, 1
      %s229 = smul.addr %s228, 36
      %s230 = smul.addr %s229, 4
      %s231 = scalar_lea.vmem %s1, %s230
      %s232 = smul.u32 8, %s20
      %p233 = scmp.lt.s32.totalorder %s19, 1
      %s234 = scalar_select %p233, %s19, 1
      %p235 = scmp.lt.s32.totalorder %s232, 15
      %s236 = scalar_select %p235, %s232, 15
      %s237 = smul.addr %s236, 2
      %s238 = smul.addr %s234, 32
      %s239 = sadd.s32 %s237, %s238
      %s240 = smul.addr %s239, 4
      %s241 = scalar_lea.vmem %s2, %s240
      %s242 = smul.u32 8, %s20
      %p243 = scmp.lt.s32.totalorder %s19, 1
      %s244 = scalar_select %p243, %s19, 1
      %p245 = scmp.lt.s32.totalorder %s20, 1
      %s246 = scalar_select %p245, %s20, 1
      %s247 = smul.addr %s244, 2
      %s248 = sadd.s32 %s246, %s247
      %s249 = smul.addr %s248, 2
      %s250 = scalar_lea.vmem %s3, %s249
      %v252 = vld [vmem:[%s226] sm:$0xf]
      %v253 = vld [vmem:[%s226 + $0x4] sm:$0xf]
      %v254 = vld [vmem:[%s226 + $0x8] sm:$0xf]
      %v255 = vld [vmem:[%s226 + $0xc] sm:$0xf]
      %v256 = vld [vmem:[%s226 + $0x10] sm:$0xf]
      %v257 = vld [vmem:[%s226 + $0x14] sm:$0xf]
      %v258 = vld [vmem:[%s226 + $0x18] sm:$0xf]
      %v259 = vld [vmem:[%s226 + $0x1c] sm:$0xf]
      %v260 = vld [vmem:[%s226 + $0x20] sm:$0xf]
      %v261 = vld [vmem:[%s226 + $0x24] sm:$0xf]
      %v262 = vld [vmem:[%s226 + $0x28] sm:$0xf]
      %v263 = vld [vmem:[%s226 + $0x2c] sm:$0xf]
      %v264 = vld [vmem:[%s226 + $0x30] sm:$0xf]
      %v265 = vld [vmem:[%s226 + $0x34] sm:$0xf]
      %v266 = vld [vmem:[%s226 + $0x38] sm:$0xf]
      %v267 = vld [vmem:[%s226 + $0x3c] sm:$0xf]
      %v268 = vld [vmem:[%s226 + $0x40] sm:$0xf]
      %v269 = vld [vmem:[%s226 + $0x44] sm:$0xf]
      %v270 = vld [vmem:[%s226 + $0x48] sm:$0xf]
      %v271 = vld [vmem:[%s226 + $0x4c] sm:$0xf]
      %v288 = vunpack.c.l.b16 %v252
      %v289 = vunpack.c.l.b16 %v253
      %v290 = vunpack.c.l.b16 %v254
      %v291 = vunpack.c.l.b16 %v255
      %v292 = vunpack.c.l.b16 %v256
      %v293 = vunpack.c.l.b16 %v257
      %v294 = vunpack.c.l.b16 %v258
      %v295 = vunpack.c.l.b16 %v259
      %v296 = vunpack.c.l.b16 %v260
      %v297 = vunpack.c.l.b16 %v261
      %v298 = vunpack.c.l.b16 %v262
      %v299 = vunpack.c.l.b16 %v263
      %v300 = vunpack.c.l.b16 %v264
      %v301 = vunpack.c.l.b16 %v265
      %v302 = vunpack.c.l.b16 %v266
      %v303 = vunpack.c.l.b16 %v267
      %v304 = vpack.c.b16 %v289, %v288
      %v305 = vpack.c.b16 %v291, %v290
      %v306 = vpack.c.b16 %v293, %v292
      %v307 = vpack.c.b16 %v295, %v294
      %v308 = vpack.c.b16 %v297, %v296
      %v309 = vpack.c.b16 %v299, %v298
      %v310 = vpack.c.b16 %v301, %v300
      %v311 = vpack.c.b16 %v303, %v302
      %v313 = vshrl.u32 %v304, 16
      %v315 = vrot.slane %v313, 7
      %v316 = vshll.u32 %v304, 16
      %v318 = vor.u32 %v315, %v316
      %v320 = vshrl.u32 %v305, 16
      %v322 = vrot.slane %v320, 7
      %v323 = vshll.u32 %v305, 16
      %v325 = vor.u32 %v322, %v323
      %v327 = vshrl.u32 %v306, 16
      %v329 = vrot.slane %v327, 7
      %v330 = vshll.u32 %v306, 16
      %v332 = vor.u32 %v329, %v330
      %v334 = vshrl.u32 %v307, 16
      %v336 = vrot.slane %v334, 7
      %v337 = vshll.u32 %v307, 16
      %v339 = vor.u32 %v336, %v337
      %v341 = vshrl.u32 %v308, 16
      %v343 = vrot.slane %v341, 7
      %v344 = vshll.u32 %v308, 16
      %v346 = vor.u32 %v343, %v344
      %v348 = vshrl.u32 %v309, 16
      %v350 = vrot.slane %v348, 7
      %v351 = vshll.u32 %v309, 16
      %v353 = vor.u32 %v350, %v351
      %v355 = vshrl.u32 %v310, 16
      %v357 = vrot.slane %v355, 7
      %v358 = vshll.u32 %v310, 16
      %v360 = vor.u32 %v357, %v358
      %v362 = vshrl.u32 %v311, 16
      %v364 = vrot.slane %v362, 7
      %v365 = vshll.u32 %v311, 16
      %v367 = vor.u32 %v364, %v365
      %vm376 = vcmask 1040384
      %vm377 = vsmask.f32 256
      %vm378 = vmand %vm376, %vm377
      %v379 = vsel %vm378, 0, %v318
      %v380 = vsel %vm378, 0, %v325
      %v381 = vsel %vm378, 0, %v332
      %v382 = vsel %vm378, 0, %v339
      %v383 = vsel %vm378, 0, %v346
      %v384 = vsel %vm378, 0, %v353
      %v385 = vsel %vm378, 0, %v360
      %v386 = vsel %vm378, 0, %v367
      %v387 = vrot.slane %v316, 1
      %v388 = vor.u32 %v313, %v387
      %v389 = vrot.slane %v323, 1
      %v390 = vor.u32 %v320, %v389
      %v391 = vrot.slane %v330, 1
      %v392 = vor.u32 %v327, %v391
      %v393 = vrot.slane %v337, 1
      %v394 = vor.u32 %v334, %v393
      %v395 = vrot.slane %v344, 1
      %v396 = vor.u32 %v341, %v395
      %v397 = vrot.slane %v351, 1
      %v398 = vor.u32 %v348, %v397
      %v399 = vrot.slane %v358, 1
      %v400 = vor.u32 %v355, %v399
      %v401 = vrot.slane %v365, 1
      %v402 = vor.u32 %v362, %v401
      %vm411 = vcmask 1047552
      %vm412 = vsmask.f32 7424
      %vm413 = vmand %vm411, %vm412
      %v414 = vsel %vm413, %v388, 0
      %v415 = vsel %vm413, %v390, 0
      %v416 = vsel %vm413, %v392, 0
      %v417 = vsel %vm413, %v394, 0
      %v418 = vsel %vm413, %v396, 0
      %v419 = vsel %vm413, %v398, 0
      %v420 = vsel %vm413, %v400, 0
      %v421 = vsel %vm413, %v402, 0
      %422 = vrot.lane.b32.xlu0 %v304, 32
      %v423 = vpop.permute.xlu0 %422
      %424 = vrot.lane.b32.xlu0 %v305, 32
      %v425 = vpop.permute.xlu0 %424
      %426 = vrot.lane.b32.xlu0 %v306, 32
      %v427 = vpop.permute.xlu0 %426
      %428 = vrot.lane.b32.xlu0 %v307, 32
      %v429 = vpop.permute.xlu0 %428
      %430 = vrot.lane.b32.xlu0 %v308, 32
      %v431 = vpop.permute.xlu0 %430
      %432 = vrot.lane.b32.xlu0 %v309, 32
      %v433 = vpop.permute.xlu0 %432
      %434 = vrot.lane.b32.xlu0 %v310, 32
      %v435 = vpop.permute.xlu0 %434
      %436 = vrot.lane.b32.xlu0 %v311, 32
      %v437 = vpop.permute.xlu0 %436
      %446 = vrot.lane.b32.xlu0 %v414, 64
      %v447 = vpop.permute.xlu0 %446
      %448 = vrot.lane.b32.xlu0 %v415, 64
      %v449 = vpop.permute.xlu0 %448
      %450 = vrot.lane.b32.xlu0 %v416, 64
      %v451 = vpop.permute.xlu0 %450
      %452 = vrot.lane.b32.xlu0 %v417, 64
      %v453 = vpop.permute.xlu0 %452
      %454 = vrot.lane.b32.xlu0 %v418, 64
      %v455 = vpop.permute.xlu0 %454
      %456 = vrot.lane.b32.xlu0 %v419, 64
      %v457 = vpop.permute.xlu0 %456
      %458 = vrot.lane.b32.xlu0 %v420, 64
      %v459 = vpop.permute.xlu0 %458
      %460 = vrot.lane.b32.xlu0 %v421, 64
      %v461 = vpop.permute.xlu0 %460
      %vm462 = vcmask 261120
      %v465 = vsel %vm462, %v379, %v423
      %v468 = vsel %vm462, %v380, %v425
      %v471 = vsel %vm462, %v381, %v427
      %v474 = vsel %vm462, %v382, %v429
      %v477 = vsel %vm462, %v383, %v431
      %v480 = vsel %vm462, %v384, %v433
      %v483 = vsel %vm462, %v385, %v435
      %v486 = vsel %vm462, %v386, %v437
      %vm487 = vcmask 523264
      %v489 = vsel %vm487, %v465, %v447
      %v491 = vsel %vm487, %v468, %v449
      %v493 = vsel %vm487, %v471, %v451
      %v495 = vsel %vm487, %v474, %v453
      %v497 = vsel %vm487, %v477, %v455
      %v499 = vsel %vm487, %v480, %v457
      %v501 = vsel %vm487, %v483, %v459
      %v503 = vsel %vm487, %v486, %v461
      %v504 = vld [vmem:[%s231] sm:$0xf]
      %v505 = vld [vmem:[%s231 + $0x4] sm:$0xf]
      %v506 = vld [vmem:[%s231 + $0x8] sm:$0xf]
      %v507 = vld [vmem:[%s231 + $0xc] sm:$0xf]
      %v508 = vld [vmem:[%s231 + $0x10] sm:$0xf]
      %v509 = vld [vmem:[%s231 + $0x14] sm:$0xf]
      %v510 = vld [vmem:[%s231 + $0x18] sm:$0xf]
      %v511 = vld [vmem:[%s231 + $0x1c] sm:$0xf]
      %v512 = vld [vmem:[%s231 + $0x20] sm:$0xf]
      %v513 = vld [vmem:[%s231 + $0x24] sm:$0xf]
      %v514 = vld [vmem:[%s231 + $0x28] sm:$0xf]
      %v515 = vld [vmem:[%s231 + $0x2c] sm:$0xf]
      %v518 = vunpack.c.l.b16 %v268
      %v519 = vunpack.c.l.b16 %v269
      %v520 = vpack.c.b16 %v519, %v518
      %v522 = vshrl.u32 %v520, 16
      %v524 = vrot.slane %v522, 7
      %v525 = vshll.u32 %v520, 16
      %v527 = vor.u32 %v524, %v525
      %v529 = vsel %vm378, 0, %v527
      %v530 = vrot.slane %v525, 1
      %v531 = vor.u32 %v522, %v530
      %v533 = vsel %vm413, %v531, 0
      %534 = vrot.lane.b32.xlu0 %v520, 32
      %v535 = vpop.permute.xlu0 %534
      %537 = vrot.lane.b32.xlu0 %v533, 64
      %v538 = vpop.permute.xlu0 %537
      %v541 = vsel %vm462, %v529, %v535
      %v543 = vsel %vm487, %v541, %v538
      %v544 = vld [vmem:[%s231 + $0x30] sm:$0xf]
      %v545 = vld [vmem:[%s231 + $0x34] sm:$0xf]
      %v546 = vld [vmem:[%s231 + $0x38] sm:$0xf]
      %v547 = vld [vmem:[%s231 + $0x3c] sm:$0xf]
      %v548 = vld [vmem:[%s231 + $0x40] sm:$0xf]
      %v549 = vld [vmem:[%s231 + $0x44] sm:$0xf]
      %v550 = vld [vmem:[%s231 + $0x48] sm:$0xf]
      %v551 = vld [vmem:[%s231 + $0x4c] sm:$0xf]
      %v552 = vld [vmem:[%s231 + $0x50] sm:$0xf]
      %v553 = vld [vmem:[%s231 + $0x54] sm:$0xf]
      %v554 = vld [vmem:[%s231 + $0x58] sm:$0xf]
      %v555 = vld [vmem:[%s231 + $0x5c] sm:$0xf]
      %v568 = vunpack.c.l.b16 %v544
      %v569 = vunpack.c.l.b16 %v545
      %v570 = vunpack.c.l.b16 %v546
      %v571 = vunpack.c.l.b16 %v547
      %v572 = vunpack.c.l.b16 %v548
      %v573 = vunpack.c.l.b16 %v549
      %v574 = vunpack.c.l.b16 %v550
      %v575 = vunpack.c.l.b16 %v551
      %v576 = vunpack.c.l.b16 %v552
      %v577 = vunpack.c.l.b16 %v553
      %v578 = vunpack.c.l.b16 %v554
      %v579 = vunpack.c.l.b16 %v555
      %v580 = vpack.c.b16 %v569, %v568
      %v581 = vpack.c.b16 %v571, %v570
      %v582 = vpack.c.b16 %v573, %v572
      %v583 = vpack.c.b16 %v575, %v574
      %v584 = vpack.c.b16 %v577, %v576
      %v585 = vpack.c.b16 %v579, %v578
      %vm592 = vcmask 785408
      %v593 = vsel %vm592, %v491, 0
      %v595 = vsel %vm592, %v493, 0
      %v597 = vsel %vm592, %v495, 0
      %v599 = vsel %vm592, %v497, 0
      %v601 = vsel %vm592, %v499, 0
      %v603 = vsel %vm592, %v501, 0
      %v605 = vsel %vm592, %v503, 0
      %v607 = vsel %vm592, %v543, 0
      %609 = vmatprep.subr.bf16.mxu0 0
      %610 = vmatpush1.bf16.msra.mxu0 0
      %611 = vmatprep.subr.bf16.mxu0 0
      %612 = vmatpush1.bf16.msra.mxu0 0
      %613 = vmatprep.subr.bf16.mxu0 0
      %614 = vmatpush1.bf16.msra.mxu0 %v585
      %615 = vmatprep.subr.bf16.mxu0 0
      %616 = vmatpush1.bf16.msra.mxu0 %v584
      %617 = vmatprep.subr.bf16.mxu0 0
      %618 = vmatpush1.bf16.msra.mxu0 %v583
      %619 = vmatprep.subr.bf16.mxu0 0
      %620 = vmatpush1.bf16.msra.mxu0 %v582
      %621 = vmatprep.subr.bf16.mxu0 0
      %622 = vmatpush1.bf16.msra.mxu0 %v581
      %623 = vmatprep.subr.bf16.mxu0 0
      %624 = vmatpush1.bf16.msra.mxu0 %v580
      %625 = vmatprep.subr.bf16.mxu0 0
      %626 = vmatpush2.bf16.msra.mxu0 0
      %627 = vmatprep.subr.bf16.mxu0 0
      %628 = vmatpush2.bf16.msra.mxu0 0
      %629 = vmatprep.subr.bf16.mxu0 0
      %630 = vmatpush2.bf16.msra.mxu0 0
      %631 = vmatprep.subr.bf16.mxu0 0
      %632 = vmatpush2.bf16.msra.mxu0 0
      %633 = vmatprep.subr.bf16.mxu0 0
      %634 = vmatpush2.bf16.msra.mxu0 0
      %635 = vmatprep.subr.bf16.mxu0 0
      %636 = vmatpush2.bf16.msra.mxu0 0
      %637 = vmatprep.subr.bf16.mxu0 0
      %638 = vmatpush2.bf16.msra.mxu0 0
      %639 = vmatprep.subr.bf16.mxu0 0
      %640 = vmatpush2.bf16.msra.mxu0 0
      %641 = vmatprep.mubr.bf16.mxu0 0
      %642 = vmatmul.mubr.bf16.gmra.mxu0 %v593
      %v643 = vpop.f32.mrf.mxu0
      %v644 = vadd.f32 0.0, %v643
      %v645 = vpop.f32.mrf.mxu0
      %v646 = vpop.f32.mrf.mxu0
      %v647 = vadd.f32 0.0, %v646
      %v648 = vpop.f32.mrf.mxu0
      %649 = vmatprep.mubr.bf16.mxu0 0
      %650 = vmatmul.mubr.bf16.gmra.mxu0 %v595
      %v651 = vpop.f32.mrf.mxu0
      %v652 = vadd.f32 0.0, %v651
      %v653 = vpop.f32.mrf.mxu0
      %v654 = vpop.f32.mrf.mxu0
      %v655 = vadd.f32 0.0, %v654
      %v656 = vpop.f32.mrf.mxu0
      %657 = vmatprep.mubr.bf16.mxu0 0
      %658 = vmatmul.mubr.bf16.gmra.mxu0 %v597
      %v659 = vpop.f32.mrf.mxu0
      %v660 = vadd.f32 0.0, %v659
      %v661 = vpop.f32.mrf.mxu0
      %v662 = vpop.f32.mrf.mxu0
      %v663 = vadd.f32 0.0, %v662
      %v664 = vpop.f32.mrf.mxu0
      %665 = vmatprep.mubr.bf16.mxu0 0
      %666 = vmatmul.mubr.bf16.gmra.mxu0 %v599
      %v667 = vpop.f32.mrf.mxu0
      %v668 = vadd.f32 0.0, %v667
      %v669 = vpop.f32.mrf.mxu0
      %v670 = vpop.f32.mrf.mxu0
      %v671 = vadd.f32 0.0, %v670
      %v672 = vpop.f32.mrf.mxu0
      %673 = vmatprep.mubr.bf16.mxu0 0
      %674 = vmatmul.mubr.bf16.gmra.mxu0 %v601
      %v675 = vpop.f32.mrf.mxu0
      %v676 = vadd.f32 0.0, %v675
      %v677 = vpop.f32.mrf.mxu0
      %v678 = vpop.f32.mrf.mxu0
      %v679 = vadd.f32 0.0, %v678
      %v680 = vpop.f32.mrf.mxu0
      %681 = vmatprep.mubr.bf16.mxu0 0
      %682 = vmatmul.mubr.bf16.gmra.mxu0 %v603
      %v683 = vpop.f32.mrf.mxu0
      %v684 = vadd.f32 0.0, %v683
      %v685 = vpop.f32.mrf.mxu0
      %v686 = vpop.f32.mrf.mxu0
      %v687 = vadd.f32 0.0, %v686
      %v688 = vpop.f32.mrf.mxu0
      %689 = vmatprep.mubr.bf16.mxu0 0
      %690 = vmatmul.mubr.bf16.gmra.mxu0 %v605
      %v691 = vpop.f32.mrf.mxu0
      %v692 = vadd.f32 0.0, %v691
      %v693 = vpop.f32.mrf.mxu0
      %v694 = vpop.f32.mrf.mxu0
      %v695 = vadd.f32 0.0, %v694
      %v696 = vpop.f32.mrf.mxu0
      %697 = vmatprep.mubr.bf16.mxu0 0
      %698 = vmatmul.mubr.bf16.gmra.mxu0 %v607
      %v699 = vpop.f32.mrf.mxu0
      %v700 = vadd.f32 0.0, %v699
      %v701 = vpop.f32.mrf.mxu0
      %v702 = vpop.f32.mrf.mxu0
      %v703 = vadd.f32 0.0, %v702
      %v704 = vpop.f32.mrf.mxu0
      %705 = vdwg.mxu0
      %v718 = vunpack.c.l.b16 %v504
      %v719 = vunpack.c.l.b16 %v505
      %v720 = vunpack.c.l.b16 %v506
      %v721 = vunpack.c.l.b16 %v507
      %v722 = vunpack.c.l.b16 %v508
      %v723 = vunpack.c.l.b16 %v509
      %v724 = vunpack.c.l.b16 %v510
      %v725 = vunpack.c.l.b16 %v511
      %v726 = vunpack.c.l.b16 %v512
      %v727 = vunpack.c.l.b16 %v513
      %v728 = vunpack.c.l.b16 %v514
      %v729 = vunpack.c.l.b16 %v515
      %v730 = vpack.c.b16 %v719, %v718
      %v731 = vpack.c.b16 %v721, %v720
      %v732 = vpack.c.b16 %v723, %v722
      %v733 = vpack.c.b16 %v725, %v724
      %v734 = vpack.c.b16 %v727, %v726
      %v735 = vpack.c.b16 %v729, %v728
      %v742 = vsel %vm592, %v489, 0
      %744 = vmatprep.subr.bf16.mxu0 0
      %745 = vmatpush1.bf16.msra.mxu0 0
      %746 = vmatprep.subr.bf16.mxu0 0
      %747 = vmatpush1.bf16.msra.mxu0 0
      %748 = vmatprep.subr.bf16.mxu0 0
      %749 = vmatpush1.bf16.msra.mxu0 %v735
      %750 = vmatprep.subr.bf16.mxu0 0
      %751 = vmatpush1.bf16.msra.mxu0 %v734
      %752 = vmatprep.subr.bf16.mxu0 0
      %753 = vmatpush1.bf16.msra.mxu0 %v733
      %754 = vmatprep.subr.bf16.mxu0 0
      %755 = vmatpush1.bf16.msra.mxu0 %v732
      %756 = vmatprep.subr.bf16.mxu0 0
      %757 = vmatpush1.bf16.msra.mxu0 %v731
      %758 = vmatprep.subr.bf16.mxu0 0
      %759 = vmatpush1.bf16.msra.mxu0 %v730
      %760 = vmatprep.subr.bf16.mxu0 0
      %761 = vmatpush2.bf16.msra.mxu0 0
      %762 = vmatprep.subr.bf16.mxu0 0
      %763 = vmatpush2.bf16.msra.mxu0 0
      %764 = vmatprep.subr.bf16.mxu0 0
      %765 = vmatpush2.bf16.msra.mxu0 0
      %766 = vmatprep.subr.bf16.mxu0 0
      %767 = vmatpush2.bf16.msra.mxu0 0
      %768 = vmatprep.subr.bf16.mxu0 0
      %769 = vmatpush2.bf16.msra.mxu0 0
      %770 = vmatprep.subr.bf16.mxu0 0
      %771 = vmatpush2.bf16.msra.mxu0 0
      %772 = vmatprep.subr.bf16.mxu0 0
      %773 = vmatpush2.bf16.msra.mxu0 0
      %774 = vmatprep.subr.bf16.mxu0 0
      %775 = vmatpush2.bf16.msra.mxu0 0
      %776 = vmatprep.mubr.bf16.mxu0 0
      %777 = vmatmul.mubr.bf16.gmra.mxu0 %v742
      %v778 = vpop.f32.mrf.mxu0
      %v779 = vadd.f32 %v644, %v778
      %v780 = vpop.f32.mrf.mxu0
      %v781 = vpop.f32.mrf.mxu0
      %v782 = vadd.f32 %v647, %v781
      %v783 = vpop.f32.mrf.mxu0
      %784 = vmatprep.mubr.bf16.mxu0 0
      %785 = vmatmul.mubr.bf16.gmra.mxu0 %v593
      %v786 = vpop.f32.mrf.mxu0
      %v787 = vadd.f32 %v652, %v786
      %v788 = vpop.f32.mrf.mxu0
      %v789 = vpop.f32.mrf.mxu0
      %v790 = vadd.f32 %v655, %v789
      %v791 = vpop.f32.mrf.mxu0
      %792 = vmatprep.mubr.bf16.mxu0 0
      %793 = vmatmul.mubr.bf16.gmra.mxu0 %v595
      %v794 = vpop.f32.mrf.mxu0
      %v795 = vadd.f32 %v660, %v794
      %v796 = vpop.f32.mrf.mxu0
      %v797 = vpop.f32.mrf.mxu0
      %v798 = vadd.f32 %v663, %v797
      %v799 = vpop.f32.mrf.mxu0
      %800 = vmatprep.mubr.bf16.mxu0 0
      %801 = vmatmul.mubr.bf16.gmra.mxu0 %v597
      %v802 = vpop.f32.mrf.mxu0
      %v803 = vadd.f32 %v668, %v802
      %v804 = vpop.f32.mrf.mxu0
      %v805 = vpop.f32.mrf.mxu0
      %v806 = vadd.f32 %v671, %v805
      %v807 = vpop.f32.mrf.mxu0
      %808 = vmatprep.mubr.bf16.mxu0 0
      %809 = vmatmul.mubr.bf16.gmra.mxu0 %v599
      %v810 = vpop.f32.mrf.mxu0
      %v811 = vadd.f32 %v676, %v810
      %v812 = vpop.f32.mrf.mxu0
      %v813 = vpop.f32.mrf.mxu0
      %v814 = vadd.f32 %v679, %v813
      %v815 = vpop.f32.mrf.mxu0
      %816 = vmatprep.mubr.bf16.mxu0 0
      %817 = vmatmul.mubr.bf16.gmra.mxu0 %v601
      %v818 = vpop.f32.mrf.mxu0
      %v819 = vadd.f32 %v684, %v818
      %v820 = vpop.f32.mrf.mxu0
      %v821 = vpop.f32.mrf.mxu0
      %v822 = vadd.f32 %v687, %v821
      %v823 = vpop.f32.mrf.mxu0
      %824 = vmatprep.mubr.bf16.mxu0 0
      %825 = vmatmul.mubr.bf16.gmra.mxu0 %v603
      %v826 = vpop.f32.mrf.mxu0
      %v827 = vadd.f32 %v692, %v826
      %v828 = vpop.f32.mrf.mxu0
      %v829 = vpop.f32.mrf.mxu0
      %v830 = vadd.f32 %v695, %v829
      %v831 = vpop.f32.mrf.mxu0
      %832 = vmatprep.mubr.bf16.mxu0 0
      %833 = vmatmul.mubr.bf16.gmra.mxu0 %v605
      %v834 = vpop.f32.mrf.mxu0
      %v835 = vadd.f32 %v700, %v834
      %v836 = vpop.f32.mrf.mxu0
      %v837 = vpop.f32.mrf.mxu0
      %v838 = vadd.f32 %v703, %v837
      %v839 = vpop.f32.mrf.mxu0
      %840 = vdwg.mxu0
      %v843 = vunpack.c.l.b16 %v270
      %v844 = vunpack.c.l.b16 %v271
      %v845 = vpack.c.b16 %v844, %v843
      %v847 = vshrl.u32 %v845, 16
      %v849 = vrot.slane %v847, 7
      %v850 = vshll.u32 %v845, 16
      %v852 = vor.u32 %v849, %v850
      %v854 = vsel %vm378, 0, %v852
      %v855 = vrot.slane %v850, 1
      %v856 = vor.u32 %v847, %v855
      %v858 = vsel %vm413, %v856, 0
      %859 = vrot.lane.b32.xlu0 %v845, 32
      %v860 = vpop.permute.xlu0 %859
      %862 = vrot.lane.b32.xlu0 %v858, 64
      %v863 = vpop.permute.xlu0 %862
      %v866 = vsel %vm462, %v854, %v860
      %v868 = vsel %vm487, %v866, %v863
      %v869 = vld [vmem:[%s231 + $0x60] sm:$0xf]
      %v870 = vld [vmem:[%s231 + $0x64] sm:$0xf]
      %v871 = vld [vmem:[%s231 + $0x68] sm:$0xf]
      %v872 = vld [vmem:[%s231 + $0x6c] sm:$0xf]
      %v873 = vld [vmem:[%s231 + $0x70] sm:$0xf]
      %v874 = vld [vmem:[%s231 + $0x74] sm:$0xf]
      %v875 = vld [vmem:[%s231 + $0x78] sm:$0xf]
      %v876 = vld [vmem:[%s231 + $0x7c] sm:$0xf]
      %v877 = vld [vmem:[%s231 + $0x80] sm:$0xf]
      %v878 = vld [vmem:[%s231 + $0x84] sm:$0xf]
      %v879 = vld [vmem:[%s231 + $0x88] sm:$0xf]
      %v880 = vld [vmem:[%s231 + $0x8c] sm:$0xf]
      %v893 = vunpack.c.l.b16 %v869
      %v894 = vunpack.c.l.b16 %v870
      %v895 = vunpack.c.l.b16 %v871
      %v896 = vunpack.c.l.b16 %v872
      %v897 = vunpack.c.l.b16 %v873
      %v898 = vunpack.c.l.b16 %v874
      %v899 = vunpack.c.l.b16 %v875
      %v900 = vunpack.c.l.b16 %v876
      %v901 = vunpack.c.l.b16 %v877
      %v902 = vunpack.c.l.b16 %v878
      %v903 = vunpack.c.l.b16 %v879
      %v904 = vunpack.c.l.b16 %v880
      %v905 = vpack.c.b16 %v894, %v893
      %v906 = vpack.c.b16 %v896, %v895
      %v907 = vpack.c.b16 %v898, %v897
      %v908 = vpack.c.b16 %v900, %v899
      %v909 = vpack.c.b16 %v902, %v901
      %v910 = vpack.c.b16 %v904, %v903
      %v917 = vsel %vm592, %v868, 0
      %919 = vmatprep.subr.bf16.mxu0 0
      %920 = vmatpush1.bf16.msra.mxu0 0
      %921 = vmatprep.subr.bf16.mxu0 0
      %922 = vmatpush1.bf16.msra.mxu0 0
      %923 = vmatprep.subr.bf16.mxu0 0
      %924 = vmatpush1.bf16.msra.mxu0 %v910
      %925 = vmatprep.subr.bf16.mxu0 0
      %926 = vmatpush1.bf16.msra.mxu0 %v909
      %927 = vmatprep.subr.bf16.mxu0 0
      %928 = vmatpush1.bf16.msra.mxu0 %v908
      %929 = vmatprep.subr.bf16.mxu0 0
      %930 = vmatpush1.bf16.msra.mxu0 %v907
      %931 = vmatprep.subr.bf16.mxu0 0
      %932 = vmatpush1.bf16.msra.mxu0 %v906
      %933 = vmatprep.subr.bf16.mxu0 0
      %934 = vmatpush1.bf16.msra.mxu0 %v905
      %935 = vmatprep.subr.bf16.mxu0 0
      %936 = vmatpush2.bf16.msra.mxu0 0
      %937 = vmatprep.subr.bf16.mxu0 0
      %938 = vmatpush2.bf16.msra.mxu0 0
      %939 = vmatprep.subr.bf16.mxu0 0
      %940 = vmatpush2.bf16.msra.mxu0 0
      %941 = vmatprep.subr.bf16.mxu0 0
      %942 = vmatpush2.bf16.msra.mxu0 0
      %943 = vmatprep.subr.bf16.mxu0 0
      %944 = vmatpush2.bf16.msra.mxu0 0
      %945 = vmatprep.subr.bf16.mxu0 0
      %946 = vmatpush2.bf16.msra.mxu0 0
      %947 = vmatprep.subr.bf16.mxu0 0
      %948 = vmatpush2.bf16.msra.mxu0 0
      %949 = vmatprep.subr.bf16.mxu0 0
      %950 = vmatpush2.bf16.msra.mxu0 0
      %951 = vmatprep.mubr.bf16.mxu0 0
      %952 = vmatmul.mubr.bf16.gmra.mxu0 %v595
      %v953 = vpop.f32.mrf.mxu0
      %v954 = vadd.f32 0.0, %v953
      %v955 = vpop.f32.mrf.mxu0
      %v956 = vpop.f32.mrf.mxu0
      %v957 = vadd.f32 0.0, %v956
      %v958 = vpop.f32.mrf.mxu0
      %959 = vmatprep.mubr.bf16.mxu0 0
      %960 = vmatmul.mubr.bf16.gmra.mxu0 %v597
      %v961 = vpop.f32.mrf.mxu0
      %v962 = vadd.f32 0.0, %v961
      %v963 = vpop.f32.mrf.mxu0
      %v964 = vpop.f32.mrf.mxu0
      %v965 = vadd.f32 0.0, %v964
      %v966 = vpop.f32.mrf.mxu0
      %967 = vmatprep.mubr.bf16.mxu0 0
      %968 = vmatmul.mubr.bf16.gmra.mxu0 %v599
      %v969 = vpop.f32.mrf.mxu0
      %v970 = vadd.f32 0.0, %v969
      %v971 = vpop.f32.mrf.mxu0
      %v972 = vpop.f32.mrf.mxu0
      %v973 = vadd.f32 0.0, %v972
      %v974 = vpop.f32.mrf.mxu0
      %975 = vmatprep.mubr.bf16.mxu0 0
      %976 = vmatmul.mubr.bf16.gmra.mxu0 %v601
      %v977 = vpop.f32.mrf.mxu0
      %v978 = vadd.f32 0.0, %v977
      %v979 = vpop.f32.mrf.mxu0
      %v980 = vpop.f32.mrf.mxu0
      %v981 = vadd.f32 0.0, %v980
      %v982 = vpop.f32.mrf.mxu0
      %983 = vmatprep.mubr.bf16.mxu0 0
      %984 = vmatmul.mubr.bf16.gmra.mxu0 %v603
      %v985 = vpop.f32.mrf.mxu0
      %v986 = vadd.f32 0.0, %v985
      %v987 = vpop.f32.mrf.mxu0
      %v988 = vpop.f32.mrf.mxu0
      %v989 = vadd.f32 0.0, %v988
      %v990 = vpop.f32.mrf.mxu0
      %991 = vmatprep.mubr.bf16.mxu0 0
      %992 = vmatmul.mubr.bf16.gmra.mxu0 %v605
      %v993 = vpop.f32.mrf.mxu0
      %v994 = vadd.f32 0.0, %v993
      %v995 = vpop.f32.mrf.mxu0
      %v996 = vpop.f32.mrf.mxu0
      %v997 = vadd.f32 0.0, %v996
      %v998 = vpop.f32.mrf.mxu0
      %999 = vmatprep.mubr.bf16.mxu0 0
      %1000 = vmatmul.mubr.bf16.gmra.mxu0 %v607
      %v1001 = vpop.f32.mrf.mxu0
      %v1002 = vadd.f32 0.0, %v1001
      %v1003 = vpop.f32.mrf.mxu0
      %v1004 = vpop.f32.mrf.mxu0
      %v1005 = vadd.f32 0.0, %v1004
      %v1006 = vpop.f32.mrf.mxu0
      %1007 = vmatprep.mubr.bf16.mxu0 0
      %1008 = vmatmul.mubr.bf16.gmra.mxu0 %v917
      %v1009 = vpop.f32.mrf.mxu0
      %v1010 = vadd.f32 0.0, %v1009
      %v1011 = vpop.f32.mrf.mxu0
      %v1012 = vpop.f32.mrf.mxu0
      %v1013 = vadd.f32 0.0, %v1012
      %v1014 = vpop.f32.mrf.mxu0
      %1015 = vdwg.mxu0
      %v1016 = vadd.f32 %v779, %v954
      %v1017 = vadd.f32 %v782, %v957
      %v1018 = vadd.f32 %v787, %v962
      %v1019 = vadd.f32 %v790, %v965
      %v1020 = vadd.f32 %v795, %v970
      %v1021 = vadd.f32 %v798, %v973
      %v1022 = vadd.f32 %v803, %v978
      %v1023 = vadd.f32 %v806, %v981
      %v1024 = vadd.f32 %v811, %v986
      %v1025 = vadd.f32 %v814, %v989
      %v1026 = vadd.f32 %v819, %v994
      %v1027 = vadd.f32 %v822, %v997
      %v1028 = vadd.f32 %v827, %v1002
      %v1029 = vadd.f32 %v830, %v1005
      %v1030 = vadd.f32 %v835, %v1010
      %v1031 = vadd.f32 %v838, %v1013
      %v1032 = vpack.c.bf16 %v1017, %v1016
      %v1033 = vpack.c.bf16 %v1019, %v1018
      %v1034 = vpack.c.bf16 %v1021, %v1020
      %v1035 = vpack.c.bf16 %v1023, %v1022
      %v1036 = vpack.c.bf16 %v1025, %v1024
      %v1037 = vpack.c.bf16 %v1027, %v1026
      %v1038 = vpack.c.bf16 %v1029, %v1028
      %v1039 = vpack.c.bf16 %v1031, %v1030
      %v1048 = vunpack.c.l.b16 %v1032
      %v1049 = vunpack.c.h.b16 %v1032
      %v1050 = vunpack.c.l.b16 %v1033
      %v1051 = vunpack.c.h.b16 %v1033
      %v1052 = vunpack.c.l.b16 %v1034
      %v1053 = vunpack.c.h.b16 %v1034
      %v1054 = vunpack.c.l.b16 %v1035
      %v1055 = vunpack.c.h.b16 %v1035
      %v1056 = vunpack.c.l.b16 %v1036
      %v1057 = vunpack.c.h.b16 %v1036
      %v1058 = vunpack.c.l.b16 %v1037
      %v1059 = vunpack.c.h.b16 %v1037
      %v1060 = vunpack.c.l.b16 %v1038
      %v1061 = vunpack.c.h.b16 %v1038
      %v1062 = vunpack.c.l.b16 %v1039
      %v1063 = vunpack.c.h.b16 %v1039
      %v1064 = vpack.c.b16 %v1048, %v1048
      %v1065 = vpack.c.b16 %v1049, %v1049
      %v1066 = vpack.c.b16 %v1050, %v1050
      %v1067 = vpack.c.b16 %v1051, %v1051
      %v1068 = vpack.c.b16 %v1052, %v1052
      %v1069 = vpack.c.b16 %v1053, %v1053
      %v1070 = vpack.c.b16 %v1054, %v1054
      %v1071 = vpack.c.b16 %v1055, %v1055
      %v1072 = vpack.c.b16 %v1056, %v1056
      %v1073 = vpack.c.b16 %v1057, %v1057
      %v1074 = vpack.c.b16 %v1058, %v1058
      %v1075 = vpack.c.b16 %v1059, %v1059
      %v1076 = vpack.c.b16 %v1060, %v1060
      %v1077 = vpack.c.b16 %v1061, %v1061
      %v1078 = vpack.c.b16 %v1062, %v1062
      %v1079 = vpack.c.b16 %v1063, %v1063
      %vm1096 = vcmask 257024
      %1097 = vst.msk [vmem:[%s241] sm:$0xf] %vm1096, %v1064
      %1098 = vst.msk [vmem:[%s241 + $0x4] sm:$0xf] %vm1096, %v1065
      %1099 = vst.msk [vmem:[%s241 + $0x8] sm:$0xf] %vm1096, %v1066
      %1100 = vst.msk [vmem:[%s241 + $0xc] sm:$0xf] %vm1096, %v1067
      %1101 = vst.msk [vmem:[%s241 + $0x10] sm:$0xf] %vm1096, %v1068
      %1102 = vst.msk [vmem:[%s241 + $0x14] sm:$0xf] %vm1096, %v1069
      %1103 = vst.msk [vmem:[%s241 + $0x18] sm:$0xf] %vm1096, %v1070
      %1104 = vst.msk [vmem:[%s241 + $0x1c] sm:$0xf] %vm1096, %v1071
      %1105 = vst.msk [vmem:[%s241 + $0x20] sm:$0xf] %vm1096, %v1072
      %1106 = vst.msk [vmem:[%s241 + $0x24] sm:$0xf] %vm1096, %v1073
      %1107 = vst.msk [vmem:[%s241 + $0x28] sm:$0xf] %vm1096, %v1074
      %1108 = vst.msk [vmem:[%s241 + $0x2c] sm:$0xf] %vm1096, %v1075
      %1109 = vst.msk [vmem:[%s241 + $0x30] sm:$0xf] %vm1096, %v1076
      %1110 = vst.msk [vmem:[%s241 + $0x34] sm:$0xf] %vm1096, %v1077
      %1111 = vst.msk [vmem:[%s241 + $0x38] sm:$0xf] %vm1096, %v1078
      %1112 = vst.msk [vmem:[%s241 + $0x3c] sm:$0xf] %vm1096, %v1079
      %v1113 = vsel %vm462, %v1016, 0.0
      %v1114 = vsel %vm462, %v1017, 0.0
      %v1115 = vadd.f32 %v1113, %v1114
      %v1116 = vsel %vm462, %v1018, 0.0
      %v1117 = vadd.f32 %v1115, %v1116
      %v1118 = vsel %vm462, %v1019, 0.0
      %v1119 = vadd.f32 %v1117, %v1118
      %v1120 = vsel %vm462, %v1020, 0.0
      %v1121 = vadd.f32 %v1119, %v1120
      %v1122 = vsel %vm462, %v1021, 0.0
      %v1123 = vadd.f32 %v1121, %v1122
      %v1124 = vsel %vm462, %v1022, 0.0
      %v1125 = vadd.f32 %v1123, %v1124
      %v1126 = vsel %vm462, %v1023, 0.0
      %v1127 = vadd.f32 %v1125, %v1126
      %v1128 = vsel %vm462, %v1024, 0.0
      %v1129 = vadd.f32 %v1127, %v1128
      %v1130 = vsel %vm462, %v1025, 0.0
      %v1131 = vadd.f32 %v1129, %v1130
      %v1132 = vsel %vm462, %v1026, 0.0
      %v1133 = vadd.f32 %v1131, %v1132
      %v1134 = vsel %vm462, %v1027, 0.0
      %v1135 = vadd.f32 %v1133, %v1134
      %v1136 = vsel %vm462, %v1028, 0.0
      %v1137 = vadd.f32 %v1135, %v1136
      %v1138 = vsel %vm462, %v1029, 0.0
      %v1139 = vadd.f32 %v1137, %v1138
      %v1140 = vsel %vm462, %v1030, 0.0
      %v1141 = vadd.f32 %v1139, %v1140
      %v1142 = vsel %vm462, %v1031, 0.0
      %v1143 = vadd.f32 %v1141, %v1142
      %v1144 = vrot.slane %v1143, 4
      %v1145 = vadd.f32 %v1143, %v1144
      %v1146 = vrot.slane %v1145, 2
      %v1147 = vadd.f32 %v1145, %v1146
      %v1148 = vrot.slane %v1147, 1
      %v1149 = vadd.f32 %v1147, %v1148
      %v1150 = vmul.f32 %v1016, %v1016
      %v1151 = vmul.f32 %v1017, %v1017
      %v1152 = vmul.f32 %v1018, %v1018
      %v1153 = vmul.f32 %v1019, %v1019
      %v1154 = vmul.f32 %v1020, %v1020
      %v1155 = vmul.f32 %v1021, %v1021
      %v1156 = vmul.f32 %v1022, %v1022
      %v1157 = vmul.f32 %v1023, %v1023
      %v1158 = vmul.f32 %v1024, %v1024
      %v1159 = vmul.f32 %v1025, %v1025
      %v1160 = vmul.f32 %v1026, %v1026
      %v1161 = vmul.f32 %v1027, %v1027
      %v1162 = vmul.f32 %v1028, %v1028
      %v1163 = vmul.f32 %v1029, %v1029
      %v1164 = vmul.f32 %v1030, %v1030
      %v1165 = vmul.f32 %v1031, %v1031
      %v1166 = vsel %vm462, %v1150, 0.0
      %v1167 = vsel %vm462, %v1151, 0.0
      %v1168 = vadd.f32 %v1166, %v1167
      %v1169 = vsel %vm462, %v1152, 0.0
      %v1170 = vadd.f32 %v1168, %v1169
      %v1171 = vsel %vm462, %v1153, 0.0
      %v1172 = vadd.f32 %v1170, %v1171
      %v1173 = vsel %vm462, %v1154, 0.0
      %v1174 = vadd.f32 %v1172, %v1173
      %v1175 = vsel %vm462, %v1155, 0.0
      %v1176 = vadd.f32 %v1174, %v1175
      %v1177 = vsel %vm462, %v1156, 0.0
      %v1178 = vadd.f32 %v1176, %v1177
      %v1179 = vsel %vm462, %v1157, 0.0
      %v1180 = vadd.f32 %v1178, %v1179
      %v1181 = vsel %vm462, %v1158, 0.0
      %v1182 = vadd.f32 %v1180, %v1181
      %v1183 = vsel %vm462, %v1159, 0.0
      %v1184 = vadd.f32 %v1182, %v1183
      %v1185 = vsel %vm462, %v1160, 0.0
      %v1186 = vadd.f32 %v1184, %v1185
      %v1187 = vsel %vm462, %v1161, 0.0
      %v1188 = vadd.f32 %v1186, %v1187
      %v1189 = vsel %vm462, %v1162, 0.0
      %v1190 = vadd.f32 %v1188, %v1189
      %v1191 = vsel %vm462, %v1163, 0.0
      %v1192 = vadd.f32 %v1190, %v1191
      %v1193 = vsel %vm462, %v1164, 0.0
      %v1194 = vadd.f32 %v1192, %v1193
      %v1195 = vsel %vm462, %v1165, 0.0
      %v1196 = vadd.f32 %v1194, %v1195
      %v1197 = vrot.slane %v1196, 4
      %v1198 = vadd.f32 %v1196, %v1197
      %v1199 = vrot.slane %v1198, 2
      %v1200 = vadd.f32 %v1198, %v1199
      %v1201 = vrot.slane %v1200, 1
      %v1202 = vadd.f32 %v1200, %v1201
      %vm1203 = vcmask 1040384
      %v1204 = vsel %vm1203, %v1149, %v1202
      %vm1205 = vcmask 254976
      %1206 = vst.msk [vmem:[%s250] sm:$0x3] %vm1205, %v1204
      %s1207 = smul.u32 8, %s20
      %p1208 = scmp.lt.s32.totalorder %s19, 1
      %s1209 = scalar_select %p1208, %s19, 1
      %p1210 = scmp.lt.s32.totalorder %s1207, 15
      %s1211 = scalar_select %p1210, %s1207, 15
      %s1212 = smul.addr %s1211, 2
      %s1213 = smul.addr %s1209, 32
      %s1214 = sadd.s32 %s1212, %s1213
      %s1215 = smul.addr %s1214, 4
      %s1216 = scalar_lea.vmem %s2, %s1215
      %p1217 = scmp.lt.s32.totalorder %s19, 1
      %s1218 = scalar_select %p1217, %s19, 1
      %p1219 = scmp.lt.s32.totalorder %s20, 1
      %s1220 = scalar_select %p1219, %s20, 1
      %s1221 = smul.addr %s1218, 2
      %s1222 = sadd.s32 %s1220, %s1221
      %s1223 = smul.addr %s1222, 2
      %s1224 = scalar_lea.vmem %s3, %s1223
      // Predicated region
      $region29: #{deam_forward.4} parent=27 // pred_check
        %p1225 = pneg %p101
      $region30: #{deam_forward.4} parent=27 // pred_check_branch
        %1227 = sbr.rel (%p1225) target = $region32
      $region31: #{deam_forward.4} parent=27 // pred_region
        %s1228 = smul.u32 8, %s20
      $region32: #{deam_forward.4} parent=27 // pred_fallthru
        _
      // Predicated region
      $region33: #{deam_forward.4} parent=27 // pred_check
        %p1229 = pneg %p129
      $region34: #{deam_forward.4} parent=27 // pred_check_branch
        %1231 = sbr.rel (%p1229) target = $region36
      $region35: #{deam_forward.4} parent=27 // pred_region
        _
      $region36: #{deam_forward.4} parent=27 // pred_fallthru
        _
    $region28: #{deam_forward.4} parent=5 // pred_fallthru
      _
    %p1232 = scmp.le.s32.totalorder 2, %s10
    // Predicated region
    $region37: #{deam_forward.4} parent=5 // pred_check
      %p1233 = pneg %p1232
    $region38: #{deam_forward.4} parent=5 // pred_check_branch
      %1235 = sbr.rel (%p1233) target = $region40
    $region39: #{deam_forward.4} parent=5 // pred_region
      %s1236 = ssub.s32 %s10, 2
      // Predicated region
      $region41: #{deam_forward.4} parent=39 // pred_check
        %p1237 = pneg %p107
      $region42: #{deam_forward.4} parent=39 // pred_check_branch
        %1239 = sbr.rel (%p1237) target = $region44
      $region43: #{deam_forward.4} parent=39 // pred_region
        %s1240 = smul.u32 8, %s22
        %p1241 = scmp.lt.s32.totalorder %s21, 1
        %s1242 = scalar_select %p1241, %s21, 1
        %p1243 = scmp.lt.s32.totalorder %s1240, 15
        %s1244 = scalar_select %p1243, %s1240, 15
        %s1245 = smul.addr %s1244, 2
        %s1246 = smul.addr %s1242, 32
        %s1247 = sadd.s32 %s1245, %s1246
        %s1248 = smul.addr %s1247, 4
        %s1249 = scalar_lea.vmem %s2, %s1248
      $region44: #{deam_forward.4} parent=39 // pred_fallthru
        _
      // Predicated region
      $region45: #{deam_forward.4} parent=39 // pred_check
        %p1250 = pneg %p135
      $region46: #{deam_forward.4} parent=39 // pred_check_branch
        %1252 = sbr.rel (%p1250) target = $region48
      $region47: #{deam_forward.4} parent=39 // pred_region
        %p1253 = scmp.lt.s32.totalorder %s21, 1
        %s1254 = scalar_select %p1253, %s21, 1
        %p1255 = scmp.lt.s32.totalorder %s22, 1
        %s1256 = scalar_select %p1255, %s22, 1
        %s1257 = smul.addr %s1254, 2
        %s1258 = sadd.s32 %s1256, %s1257
        %s1259 = smul.addr %s1258, 2
        %s1260 = scalar_lea.vmem %s3, %s1259
      $region48: #{deam_forward.4} parent=39 // pred_fallthru
        _
    $region40: #{deam_forward.4} parent=5 // pred_fallthru
      _
  $region6: #{deam_forward.4} parent=0 // loop_footer
    %s14 = sadd.s32 1, %s10
  $region7: #{deam_forward.4} parent=0 // loop_footer_branch
    %9 = sbr.rel target = $region3
  $region8: #{deam_forward.4} parent=0 // loop_exit
    _

</llo_original>
